<compile_context>
chip_gen: v5e
topology: v5e:2x2
jax: 0.10.0
libtpu: 0.0.40
codegen_flags: <defaults>
</compile_context>

<pallas_src>
import functools

import jax
import jax.numpy as jnp
from jax import lax
from jax.experimental import pallas as pl
from jax.experimental.pallas import tpu as pltpu


def linear_attention_kernel(x_ref, wqkv_ref, wo_ref, bo_ref, o_ref, *,
                            heads, dim_head):
    # x_ref:    (1, C, N)        one batch element, channels on sublanes, N on lanes
    # wqkv_ref: (3*hidden, C)    fused to_qkv 1x1-conv weight (all heads, q|k|v)
    # wo_ref:   (C, hidden)      to_out 1x1-conv weight
    # bo_ref:   (C, 1)           to_out bias (broadcast over N)
    # o_ref:    (1, C, N)        output (written exactly once)
    hidden = heads * dim_head
    cdt = wqkv_ref.dtype                      # MXU compute dtype (f32 or bf16)

    x = x_ref[0]                                                        # (C, N)

    # Fused qkv projection for all heads at once: (3*hidden, C) @ (C, N).
    qkv = jnp.dot(wqkv_ref[...], x,
                  preferred_element_type=jnp.float32)                   # (3*hidden, N) f32

    q_all = qkv[:hidden]                                                # (hidden, N)
    k_all = qkv[hidden:2 * hidden]
    v_all = qkv[2 * hidden:].astype(cdt)

    outs = []
    for h in range(heads):                    # static 4-way unrolled head loop
        sl = slice(h * dim_head, (h + 1) * dim_head)
        q = q_all[sl]                                                   # (DH, N)
        k = k_all[sl]
        v = v_all[sl]

        # softmax over the spatial (lane) axis, per (head, dim_head) channel; f32.
        k = jnp.exp(k - jnp.max(k, axis=-1, keepdims=True))
        k = k * pl.reciprocal(jnp.sum(k, axis=-1, keepdims=True), approx=False)

        # context[d, e] = sum_n k[d, n] * v[e, n]   ('bhdn,bhen->bhde')
        context = lax.dot_general(k.astype(cdt), v,
                                  (((1,), (1,)), ((), ())),
                                  preferred_element_type=jnp.float32)   # (DH, DH)
        # out[e, n] = sum_d context[d, e] * q[d, n] ('bhde,bhdn->bhen')
        out_h = lax.dot_general(context.astype(cdt), q.astype(cdt),
                                (((0,), (0,)), ((), ())),
                                preferred_element_type=jnp.float32)     # (DH, N)
        outs.append(out_h)

    out_all = jnp.concatenate(outs, axis=0).astype(cdt)                 # (hidden, N)

    # Fused output projection over all heads: (C, hidden=128) @ (hidden, N).
    res = jnp.dot(wo_ref[...], out_all,
                  preferred_element_type=jnp.float32)                   # (C, N)
    o_ref[0] = (res + bo_ref[...]).astype(o_ref.dtype)


def linear_attention(x_nchw, w_qkv, w_out, b_out, *, heads=4, dim_head=32,
                     compute_dtype=jnp.float32):
    """Pallas implementation of LinearAttention.forward.

    x_nchw : (B, C, H, W) float32
    w_qkv  : (3*heads*dim_head, C)  -- to_qkv.weight[..., 0, 0]
    w_out  : (C, heads*dim_head)    -- to_out.weight[..., 0, 0]
    b_out  : (C,)                   -- to_out.bias
    compute_dtype : dtype fed to the MXU (use jnp.bfloat16 on v6e/v7x).
    """
    B, C, H, W = x_nchw.shape
    N = H * W
    hidden = heads * dim_head

    # Native layout: just flatten spatial dims, N stays on lanes. No transposes.
    x = x_nchw.reshape(B, C, N).astype(compute_dtype)
    wqkv = w_qkv.astype(compute_dtype)                 # (3*hidden, C)
    wo = w_out.astype(compute_dtype)                   # (C, hidden)
    bo = b_out.reshape(C, 1).astype(jnp.float32)       # (C, 1)

    out = pl.pallas_call(
        functools.partial(linear_attention_kernel, heads=heads, dim_head=dim_head),
        out_shape=jax.ShapeDtypeStruct((B, C, N), jnp.float32),
        grid_spec=pltpu.PrefetchScalarGridSpec(
            num_scalar_prefetch=0,
            grid=(B,),
            in_specs=[
                pl.BlockSpec((1, C, N), lambda b: (b, 0, 0)),
                # Weights/bias: full-array blocks, index_map ignores the grid
                # index -> DMA'd once, resident in VMEM across all batches.
                pl.BlockSpec((3 * hidden, C), lambda b: (0, 0)),
                pl.BlockSpec((C, hidden), lambda b: (0, 0)),
                pl.BlockSpec((C, 1), lambda b: (0, 0)),
            ],
            out_specs=pl.BlockSpec((1, C, N), lambda b: (b, 0, 0)),
        ),
        compiler_params=pltpu.CompilerParams(
            dimension_semantics=("parallel",)),
    )(x, wqkv, wo, bo)

    return out.reshape(B, C, H, W)


def linear_attention_reference(x_nchw, w_qkv, w_out, b_out, *, heads=4, dim_head=32):
    """Pure-JAX reference matching the PyTorch forward exactly."""
    B, C, H, W = x_nchw.shape
    N = H * W
    hidden = heads * dim_head
    xf = x_nchw.reshape(B, C, N)                                   # (B, C, N)
    qkv = jnp.einsum('oc,bcn->bon', w_qkv, xf)                     # (B, 3*hidden, N)
    qkv = qkv.reshape(B, 3, heads, dim_head, N)
    q, k, v = qkv[:, 0], qkv[:, 1], qkv[:, 2]                      # (B, heads, dh, N)
    k = jax.nn.softmax(k, axis=-1)
    context = jnp.einsum('bhdn,bhen->bhde', k, v)
    out = jnp.einsum('bhde,bhdn->bhen', context, q)                # (B, heads, dh, N)
    out = out.reshape(B, hidden, N)
    res = jnp.einsum('oc,bcn->bon', w_out, out) + b_out[None, :, None]
    return res.reshape(B, C, H, W)


if __name__ == "__main__":
    B, C, H, W = 2, 4, 16, 16
    heads, dim_head = 4, 32
    hidden = heads * dim_head

    key = jax.random.PRNGKey(0)
    k1, k2, k3, k4 = jax.random.split(key, 4)
    x = jax.random.normal(k1, (B, C, H, W), dtype=jnp.float32)
    # Deterministic synthetic parameters (Conv2d 1x1 weights without the 1x1 dims).
    w_qkv = jax.random.normal(k2, (3 * hidden, C), dtype=jnp.float32) * 0.1
    w_out = jax.random.normal(k3, (C, hidden), dtype=jnp.float32) * 0.1
    b_out = jax.random.normal(k4, (C,), dtype=jnp.float32) * 0.1

    y = linear_attention(x, w_qkv, w_out, b_out, heads=heads, dim_head=dim_head)
    y = jax.block_until_ready(y)

    y_ref = linear_attention_reference(x, w_qkv, w_out, b_out,
                                       heads=heads, dim_head=dim_head)
    assert y.shape == (B, C, H, W)
    assert jnp.allclose(y, y_ref, atol=1e-4, rtol=1e-4), "mismatch vs reference"
    print("KERNEL_OK")
</pallas_src>

<mosaic_0001>
module attributes {stable_mosaic.version = 11 : i64} {
  func.func @linear_attention_kernel(%arg0: i32, %arg1: memref<1x4x256xf32, #tpu.memory_space<vmem>>, %arg2: memref<384x4xf32, #tpu.memory_space<vmem>>, %arg3: memref<4x128xf32, #tpu.memory_space<vmem>>, %arg4: memref<4x1xf32, #tpu.memory_space<vmem>>, %arg5: memref<1x4x256xf32, #tpu.memory_space<vmem>>) attributes {dimension_semantics = [#tpu.dimension_semantics<parallel>], iteration_bounds = array<i64: 2>, scalar_prefetch = 0 : i64, scratch_operands = 0 : i64, tpu.core_type = #tpu.core_type<tc>, window_params = [{transform_indices = @transform_0, window_bounds = array<i64: 1, 4, 256>}, {pipeline_mode = #tpu.pipeline_mode<synchronous>, transform_indices = @transform_1, window_bounds = array<i64: 384, 4>}, {pipeline_mode = #tpu.pipeline_mode<synchronous>, transform_indices = @transform_2, window_bounds = array<i64: 4, 128>}, {pipeline_mode = #tpu.pipeline_mode<synchronous>, transform_indices = @transform_3, window_bounds = array<i64: 4, 1>}, {transform_indices = @transform_4, window_bounds = array<i64: 1, 4, 256>}]} {
    %c0 = arith.constant 0 : index
    %c0_0 = arith.constant 0 : index
    %c0_1 = arith.constant 0 : index
    %0 = vector.load %arg1[%c0, %c0_0, %c0_1] : memref<1x4x256xf32, #tpu.memory_space<vmem>>, vector<1x4x256xf32>
    %1 = vector.shape_cast %0 : vector<1x4x256xf32> to vector<4x256xf32>
    %c0_2 = arith.constant 0 : index
    %c0_3 = arith.constant 0 : index
    %2 = vector.load %arg2[%c0_2, %c0_3] : memref<384x4xf32, #tpu.memory_space<vmem>>, vector<384x4xf32>
    %cst = arith.constant dense<0.000000e+00> : vector<384x256xf32>
    %3 = tpu.matmul %2, %1, %cst {dimension_numbers = #tpu.dot_dimension_numbers<[1], [0], [0], [1], [0, 0, 1, 1], [], []>} : vector<384x4xf32>, vector<4x256xf32>, vector<384x256xf32> -> vector<384x256xf32>
    %4 = vector.extract_strided_slice %3 {offsets = [0, 0], sizes = [128, 256], strides = [1, 1]} : vector<384x256xf32> to vector<128x256xf32>
    %5 = vector.extract_strided_slice %3 {offsets = [128, 0], sizes = [128, 256], strides = [1, 1]} : vector<384x256xf32> to vector<128x256xf32>
    %6 = vector.extract_strided_slice %3 {offsets = [256, 0], sizes = [128, 256], strides = [1, 1]} : vector<384x256xf32> to vector<128x256xf32>
    %7 = vector.extract_strided_slice %4 {offsets = [0, 0], sizes = [32, 256], strides = [1, 1]} : vector<128x256xf32> to vector<32x256xf32>
    %8 = vector.extract_strided_slice %5 {offsets = [0, 0], sizes = [32, 256], strides = [1, 1]} : vector<128x256xf32> to vector<32x256xf32>
    %9 = vector.extract_strided_slice %6 {offsets = [0, 0], sizes = [32, 256], strides = [1, 1]} : vector<128x256xf32> to vector<32x256xf32>
    %cst_4 = arith.constant dense<0xFF800000> : vector<32xf32>
    %10 = vector.multi_reduction <maximumf>, %8, %cst_4 [1] : vector<32x256xf32> to vector<32xf32>
    %11 = vector.shape_cast %10 : vector<32xf32> to vector<32x1xf32>
    %12 = vector.broadcast %11 : vector<32x1xf32> to vector<32x256xf32>
    %13 = arith.subf %8, %12 : vector<32x256xf32>
    %14 = math.exp %13 : vector<32x256xf32>
    %cst_5 = arith.constant dense<0.000000e+00> : vector<32xf32>
    %15 = vector.multi_reduction <add>, %14, %cst_5 [1] : vector<32x256xf32> to vector<32xf32>
    %16 = vector.shape_cast %15 : vector<32xf32> to vector<32x1xf32>
    %17 = tpu.reciprocal %16 : vector<32x1xf32> -> vector<32x1xf32>
    %18 = vector.broadcast %17 : vector<32x1xf32> to vector<32x256xf32>
    %19 = arith.mulf %14, %18 : vector<32x256xf32>
    %cst_6 = arith.constant dense<0.000000e+00> : vector<32x32xf32>
    %20 = tpu.matmul %19, %9, %cst_6 {dimension_numbers = #tpu.dot_dimension_numbers<[1], [1], [0], [0], [0, 0, 1, 0], [], []>} : vector<32x256xf32>, vector<32x256xf32>, vector<32x32xf32> -> vector<32x32xf32>
    %cst_7 = arith.constant dense<0.000000e+00> : vector<32x256xf32>
    %21 = tpu.matmul %20, %7, %cst_7 {dimension_numbers = #tpu.dot_dimension_numbers<[0], [0], [1], [1], [0, 1, 1, 1], [], []>} : vector<32x32xf32>, vector<32x256xf32>, vector<32x256xf32> -> vector<32x256xf32>
    %22 = vector.extract_strided_slice %4 {offsets = [32, 0], sizes = [32, 256], strides = [1, 1]} : vector<128x256xf32> to vector<32x256xf32>
    %23 = vector.extract_strided_slice %5 {offsets = [32, 0], sizes = [32, 256], strides = [1, 1]} : vector<128x256xf32> to vector<32x256xf32>
    %24 = vector.extract_strided_slice %6 {offsets = [32, 0], sizes = [32, 256], strides = [1, 1]} : vector<128x256xf32> to vector<32x256xf32>
    %cst_8 = arith.constant dense<0xFF800000> : vector<32xf32>
    %25 = vector.multi_reduction <maximumf>, %23, %cst_8 [1] : vector<32x256xf32> to vector<32xf32>
    %26 = vector.shape_cast %25 : vector<32xf32> to vector<32x1xf32>
    %27 = vector.broadcast %26 : vector<32x1xf32> to vector<32x256xf32>
    %28 = arith.subf %23, %27 : vector<32x256xf32>
    %29 = math.exp %28 : vector<32x256xf32>
    %cst_9 = arith.constant dense<0.000000e+00> : vector<32xf32>
    %30 = vector.multi_reduction <add>, %29, %cst_9 [1] : vector<32x256xf32> to vector<32xf32>
    %31 = vector.shape_cast %30 : vector<32xf32> to vector<32x1xf32>
    %32 = tpu.reciprocal %31 : vector<32x1xf32> -> vector<32x1xf32>
    %33 = vector.broadcast %32 : vector<32x1xf32> to vector<32x256xf32>
    %34 = arith.mulf %29, %33 : vector<32x256xf32>
    %cst_10 = arith.constant dense<0.000000e+00> : vector<32x32xf32>
    %35 = tpu.matmul %34, %24, %cst_10 {dimension_numbers = #tpu.dot_dimension_numbers<[1], [1], [0], [0], [0, 0, 1, 0], [], []>} : vector<32x256xf32>, vector<32x256xf32>, vector<32x32xf32> -> vector<32x32xf32>
    %cst_11 = arith.constant dense<0.000000e+00> : vector<32x256xf32>
    %36 = tpu.matmul %35, %22, %cst_11 {dimension_numbers = #tpu.dot_dimension_numbers<[0], [0], [1], [1], [0, 1, 1, 1], [], []>} : vector<32x32xf32>, vector<32x256xf32>, vector<32x256xf32> -> vector<32x256xf32>
    %37 = vector.extract_strided_slice %4 {offsets = [64, 0], sizes = [32, 256], strides = [1, 1]} : vector<128x256xf32> to vector<32x256xf32>
    %38 = vector.extract_strided_slice %5 {offsets = [64, 0], sizes = [32, 256], strides = [1, 1]} : vector<128x256xf32> to vector<32x256xf32>
    %39 = vector.extract_strided_slice %6 {offsets = [64, 0], sizes = [32, 256], strides = [1, 1]} : vector<128x256xf32> to vector<32x256xf32>
    %cst_12 = arith.constant dense<0xFF800000> : vector<32xf32>
    %40 = vector.multi_reduction <maximumf>, %38, %cst_12 [1] : vector<32x256xf32> to vector<32xf32>
    %41 = vector.shape_cast %40 : vector<32xf32> to vector<32x1xf32>
    %42 = vector.broadcast %41 : vector<32x1xf32> to vector<32x256xf32>
    %43 = arith.subf %38, %42 : vector<32x256xf32>
    %44 = math.exp %43 : vector<32x256xf32>
    %cst_13 = arith.constant dense<0.000000e+00> : vector<32xf32>
    %45 = vector.multi_reduction <add>, %44, %cst_13 [1] : vector<32x256xf32> to vector<32xf32>
    %46 = vector.shape_cast %45 : vector<32xf32> to vector<32x1xf32>
    %47 = tpu.reciprocal %46 : vector<32x1xf32> -> vector<32x1xf32>
    %48 = vector.broadcast %47 : vector<32x1xf32> to vector<32x256xf32>
    %49 = arith.mulf %44, %48 : vector<32x256xf32>
    %cst_14 = arith.constant dense<0.000000e+00> : vector<32x32xf32>
    %50 = tpu.matmul %49, %39, %cst_14 {dimension_numbers = #tpu.dot_dimension_numbers<[1], [1], [0], [0], [0, 0, 1, 0], [], []>} : vector<32x256xf32>, vector<32x256xf32>, vector<32x32xf32> -> vector<32x32xf32>
    %cst_15 = arith.constant dense<0.000000e+00> : vector<32x256xf32>
    %51 = tpu.matmul %50, %37, %cst_15 {dimension_numbers = #tpu.dot_dimension_numbers<[0], [0], [1], [1], [0, 1, 1, 1], [], []>} : vector<32x32xf32>, vector<32x256xf32>, vector<32x256xf32> -> vector<32x256xf32>
    %52 = vector.extract_strided_slice %4 {offsets = [96, 0], sizes = [32, 256], strides = [1, 1]} : vector<128x256xf32> to vector<32x256xf32>
    %53 = vector.extract_strided_slice %5 {offsets = [96, 0], sizes = [32, 256], strides = [1, 1]} : vector<128x256xf32> to vector<32x256xf32>
    %54 = vector.extract_strided_slice %6 {offsets = [96, 0], sizes = [32, 256], strides = [1, 1]} : vector<128x256xf32> to vector<32x256xf32>
    %cst_16 = arith.constant dense<0xFF800000> : vector<32xf32>
    %55 = vector.multi_reduction <maximumf>, %53, %cst_16 [1] : vector<32x256xf32> to vector<32xf32>
    %56 = vector.shape_cast %55 : vector<32xf32> to vector<32x1xf32>
    %57 = vector.broadcast %56 : vector<32x1xf32> to vector<32x256xf32>
    %58 = arith.subf %53, %57 : vector<32x256xf32>
    %59 = math.exp %58 : vector<32x256xf32>
    %cst_17 = arith.constant dense<0.000000e+00> : vector<32xf32>
    %60 = vector.multi_reduction <add>, %59, %cst_17 [1] : vector<32x256xf32> to vector<32xf32>
    %61 = vector.shape_cast %60 : vector<32xf32> to vector<32x1xf32>
    %62 = tpu.reciprocal %61 : vector<32x1xf32> -> vector<32x1xf32>
    %63 = vector.broadcast %62 : vector<32x1xf32> to vector<32x256xf32>
    %64 = arith.mulf %59, %63 : vector<32x256xf32>
    %cst_18 = arith.constant dense<0.000000e+00> : vector<32x32xf32>
    %65 = tpu.matmul %64, %54, %cst_18 {dimension_numbers = #tpu.dot_dimension_numbers<[1], [1], [0], [0], [0, 0, 1, 0], [], []>} : vector<32x256xf32>, vector<32x256xf32>, vector<32x32xf32> -> vector<32x32xf32>
    %cst_19 = arith.constant dense<0.000000e+00> : vector<32x256xf32>
    %66 = tpu.matmul %65, %52, %cst_19 {dimension_numbers = #tpu.dot_dimension_numbers<[0], [0], [1], [1], [0, 1, 1, 1], [], []>} : vector<32x32xf32>, vector<32x256xf32>, vector<32x256xf32> -> vector<32x256xf32>
    %67 = tpu.concatenate %21, %36, %51, %66 in 0 : vector<32x256xf32>, vector<32x256xf32>, vector<32x256xf32>, vector<32x256xf32> -> vector<128x256xf32>
    %c0_20 = arith.constant 0 : index
    %c0_21 = arith.constant 0 : index
    %68 = vector.load %arg3[%c0_20, %c0_21] : memref<4x128xf32, #tpu.memory_space<vmem>>, vector<4x128xf32>
    %cst_22 = arith.constant dense<0.000000e+00> : vector<4x256xf32>
    %69 = tpu.matmul %68, %67, %cst_22 {dimension_numbers = #tpu.dot_dimension_numbers<[1], [0], [0], [1], [0, 0, 1, 1], [], []>} : vector<4x128xf32>, vector<128x256xf32>, vector<4x256xf32> -> vector<4x256xf32>
    %c0_23 = arith.constant 0 : index
    %c0_24 = arith.constant 0 : index
    %70 = vector.load %arg4[%c0_23, %c0_24] : memref<4x1xf32, #tpu.memory_space<vmem>>, vector<4x1xf32>
    %71 = vector.broadcast %70 : vector<4x1xf32> to vector<4x256xf32>
    %72 = arith.addf %69, %71 : vector<4x256xf32>
    %c0_25 = arith.constant 0 : index
    %c0_26 = arith.constant 0 : index
    %c0_27 = arith.constant 0 : index
    %73 = vector.load %arg5[%c0_25, %c0_26, %c0_27] : memref<1x4x256xf32, #tpu.memory_space<vmem>>, vector<1x4x256xf32>
    %74 = vector.shape_cast %73 : vector<1x4x256xf32> to vector<4x256xf32>
    %75 = vector.shape_cast %72 : vector<4x256xf32> to vector<1x4x256xf32>
    tpu.vector_store %arg5[%c0_25, %c0_26, %c0_27], %75 {strides = array<i32>} : memref<1x4x256xf32, #tpu.memory_space<vmem>>, vector<1x4x256xf32>,
    return
  }
  func.func @transform_0(%arg0: i32) -> (i32, i32, i32) {
    %c0_i32 = arith.constant 0 : i32
    %c0_i32_0 = arith.constant 0 : i32
    %c0_i32_1 = arith.constant 0 : i32
    return %arg0, %c0_i32, %c0_i32_0 : i32, i32, i32
  }
  func.func @transform_1(%arg0: i32) -> (i32, i32) {
    %c0_i32 = arith.constant 0 : i32
    %c0_i32_0 = arith.constant 0 : i32
    %c0_i32_1 = arith.constant 0 : i32
    return %c0_i32, %c0_i32_0 : i32, i32
  }
  func.func @transform_2(%arg0: i32) -> (i32, i32) {
    %c0_i32 = arith.constant 0 : i32
    %c0_i32_0 = arith.constant 0 : i32
    %c0_i32_1 = arith.constant 0 : i32
    return %c0_i32, %c0_i32_0 : i32, i32
  }
  func.func @transform_3(%arg0: i32) -> (i32, i32) {
    %c0_i32 = arith.constant 0 : i32
    %c0_i32_0 = arith.constant 0 : i32
    %c0_i32_1 = arith.constant 0 : i32
    return %c0_i32, %c0_i32_0 : i32, i32
  }
  func.func @transform_4(%arg0: i32) -> (i32, i32, i32) {
    %c0_i32 = arith.constant 0 : i32
    %c0_i32_0 = arith.constant 0 : i32
    %c0_i32_1 = arith.constant 0 : i32
    return %arg0, %c0_i32, %c0_i32_0 : i32, i32, i32
  }
}

</mosaic_0001>

<llo_original>
// kernel: tpu_custom_call.1
$region0: #{tpu_custom_call.1}
  #allocation0 [shape = 'u32[]', space=smem, size = 0x4, offset = 0x4, fixed_abs, tag = 'smem constant byte address 0x4 - core index']
  #allocation1 [shape = 'u32[72,128]{1,0:T(1,128)}', space=vmem, size = 0x9000, scoped, tag = 'internal scratch']
  %s0 = inlined_call_operand.vmem [shape: f32[2,4,256], index: 0, kind: input, shape index: {}]
  %s1 = inlined_call_operand.vmem [shape: f32[384,4], index: 1, kind: input, shape index: {}]
  %s2 = inlined_call_operand.vmem [shape: f32[4,128], index: 2, kind: input, shape index: {}]
  %s3 = inlined_call_operand.vmem [shape: f32[4,1], index: 3, kind: input, shape index: {}]
  %s4 = inlined_call_operand.hbm [shape: f32[2,4,256], index: 4, kind: output, shape index: {}]
  %s5 = sld [smem:[#allocation0]]
  $region49: #{tpu_custom_call.1} parent=0
    _
  %s7 = ssub.s32 1, %s5
  %s8 = scalar_select 0, %s7, %s5
  $region1: #{tpu_custom_call.1} parent=0
    #allocation2 [shape = 'u8[8192]{0}', space=vmem, size = 0x2000, scoped, tag = 'output window, operand 0']
    #allocation3 [shape = 's32[2]{0}', space=sflag, size = 0x8, scoped, tag = 'scoped memory for tpu_custom_call.1']
    %9 = vsyncpa [#allocation3], 0
    %s10 = scalar_lea.sflag [#allocation3], 1
    %11 = vsyncpa %s10, 0
    loop: start=0, step=1, limit=4
    $region2: #{tpu_custom_call.1} parent=1 // loop_pre_header
      _
    $region3: #{tpu_custom_call.1} parent=1 // loop_header
      %s13 = sphi 0, %s17
      %p14 = scmp.ge.s32.totalorder %s13, 4
      %s23 = sphi 0, %s25
      %s26 = sphi 0, %s23
      %s27 = sphi 0, %s26
      %s43 = sphi 0, %s27
      %s47 = sphi 0, %s47
      %s49 = sphi 0, %s47
      %s50 = sphi 0, %s49
      %s64 = sphi 0, %s50
      %s68 = sphi 0, %s68
      %s70 = sphi 0, %s68
      %s71 = sphi 0, %s70
      %s85 = sphi 0, %s71
      %s89 = sphi 0, %s89
      %s91 = sphi 0, %s89
      %s92 = sphi 0, %s91
      %s106 = sphi 0, %s92
      %s112 = sphi 0, %s114
      %s115 = sphi 0, %s112
      %s116 = sphi 0, %s115
      %s132 = sphi 0, %s116
    $region4: #{tpu_custom_call.1} parent=1 // loop_header_branch
      %16 = sbr.rel (%p14) target = $region8
    $region5: #{tpu_custom_call.1} parent=1 // loop_body
      %s18 = ssub.s32 %s13, 1
      %s19 = ssub.s32 %s13, 2
      %s20 = sadd.s32 %s13, 1
      %s21 = ssub.s32 %s13, %s20
      %p22 = scmp.eq.s32.totalorder %s21, 0
      %s24 = sadd.s32 %s23, 1
      %s25 = scalar_select %p22, %s23, %s24
      %p28 = pneg %p22
      %p29 = scmp.eq.s32.totalorder %s13, 1
      %p30 = por %p28, %p29
      %p31 = scmp.ne.s32.totalorder %s23, %s26
      %p32 = scmp.eq.s32.totalorder %s13, 0
      %p33 = por %p31, %p32
      %p34 = scmp.ne.s32.totalorder %s23, %s26
      %p35 = scmp.eq.s32.totalorder %s18, 1
      %p36 = por %p34, %p35
      %p37 = scmp.ne.s32.totalorder %s26, %s27
      %p38 = scmp.eq.s32.totalorder %s18, 0
      %p39 = por %p37, %p38
      %p40 = scmp.ne.s32.totalorder %s26, %s27
      %p41 = scmp.eq.s32.totalorder %s19, 1
      %p42 = por %p40, %p41
      %p44 = scmp.ne.s32.totalorder %s27, %s43
      %p45 = scmp.eq.s32.totalorder %s19, 0
      %p46 = por %p44, %p45
      %s48 = sadd.s32 %s47, 1
      %p51 = scmp.eq.s32.totalorder %s13, 1
      %p52 = scmp.ne.s32.totalorder %s47, %s49
      %p53 = scmp.eq.s32.totalorder %s13, 0
      %p54 = por %p52, %p53
      %p55 = scmp.ne.s32.totalorder %s47, %s49
      %p56 = scmp.eq.s32.totalorder %s18, 1
      %p57 = por %p55, %p56
      %p58 = scmp.ne.s32.totalorder %s49, %s50
      %p59 = scmp.eq.s32.totalorder %s18, 0
      %p60 = por %p58, %p59
      %p61 = scmp.ne.s32.totalorder %s49, %s50
      %p62 = scmp.eq.s32.totalorder %s19, 1
      %p63 = por %p61, %p62
      %p65 = scmp.ne.s32.totalorder %s50, %s64
      %p66 = scmp.eq.s32.totalorder %s19, 0
      %p67 = por %p65, %p66
      %s69 = sadd.s32 %s68, 1
      %p72 = scmp.eq.s32.totalorder %s13, 1
      %p73 = scmp.ne.s32.totalorder %s68, %s70
      %p74 = scmp.eq.s32.totalorder %s13, 0
      %p75 = por %p73, %p74
      %p76 = scmp.ne.s32.totalorder %s68, %s70
      %p77 = scmp.eq.s32.totalorder %s18, 1
      %p78 = por %p76, %p77
      %p79 = scmp.ne.s32.totalorder %s70, %s71
      %p80 = scmp.eq.s32.totalorder %s18, 0
      %p81 = por %p79, %p80
      %p82 = scmp.ne.s32.totalorder %s70, %s71
      %p83 = scmp.eq.s32.totalorder %s19, 1
      %p84 = por %p82, %p83
      %p86 = scmp.ne.s32.totalorder %s71, %s85
      %p87 = scmp.eq.s32.totalorder %s19, 0
      %p88 = por %p86, %p87
      %s90 = sadd.s32 %s89, 1
      %p93 = scmp.eq.s32.totalorder %s13, 1
      %p94 = scmp.ne.s32.totalorder %s89, %s91
      %p95 = scmp.eq.s32.totalorder %s13, 0
      %p96 = por %p94, %p95
      %p97 = scmp.ne.s32.totalorder %s89, %s91
      %p98 = scmp.eq.s32.totalorder %s18, 1
      %p99 = por %p97, %p98
      %p100 = scmp.ne.s32.totalorder %s91, %s92
      %p101 = scmp.eq.s32.totalorder %s18, 0
      %p102 = por %p100, %p101
      %p103 = scmp.ne.s32.totalorder %s91, %s92
      %p104 = scmp.eq.s32.totalorder %s19, 1
      %p105 = por %p103, %p104
      %p107 = scmp.ne.s32.totalorder %s92, %s106
      %p108 = scmp.eq.s32.totalorder %s19, 0
      %p109 = por %p107, %p108
      %s110 = ssub.s32 %s13, %s20
      %p111 = scmp.eq.s32.totalorder %s110, 0
      %s113 = sadd.s32 %s112, 1
      %s114 = scalar_select %p111, %s112, %s113
      %p117 = pneg %p111
      %p118 = scmp.eq.s32.totalorder %s13, 1
      %p119 = por %p117, %p118
      %p120 = scmp.ne.s32.totalorder %s112, %s115
      %p121 = scmp.eq.s32.totalorder %s13, 0
      %p122 = por %p120, %p121
      %p123 = scmp.ne.s32.totalorder %s112, %s115
      %p124 = scmp.eq.s32.totalorder %s18, 1
      %p125 = por %p123, %p124
      %p126 = scmp.ne.s32.totalorder %s115, %s116
      %p127 = scmp.eq.s32.totalorder %s18, 0
      %p128 = por %p126, %p127
      %p129 = scmp.ne.s32.totalorder %s115, %s116
      %p130 = scmp.eq.s32.totalorder %s19, 1
      %p131 = por %p129, %p130
      %p133 = scmp.ne.s32.totalorder %s116, %s132
      %p134 = scmp.eq.s32.totalorder %s19, 0
      %p135 = por %p133, %p134
      %p136 = scmp.le.s32.totalorder 1, %s13
      %p137 = scmp.lt.s32.totalorder %s13, 3
      %p138 = pnand %p136, %p137
      %p139 = pneg %p138
      // Predicated region
      $region9: #{tpu_custom_call.1} parent=5 // pred_check
        _
      $region10: #{tpu_custom_call.1} parent=5 // pred_check_branch
        %141 = sbr.rel (%p138) target = $region12
      $region11: #{tpu_custom_call.1} parent=5 // pred_region
        %s142 = ssub.s32 %s13, 1
        // Predicated region
        $region13: #{tpu_custom_call.1} parent=11 // pred_check
          %p143 = pneg %p60
        $region14: #{tpu_custom_call.1} parent=11 // pred_check_branch
          %145 = sbr.rel (%p143) target = $region16
        $region15: #{tpu_custom_call.1} parent=11 // pred_region
          _
        $region16: #{tpu_custom_call.1} parent=11 // pred_fallthru
          _
        // Predicated region
        $region17: #{tpu_custom_call.1} parent=11 // pred_check
          %p146 = pneg %p81
        $region18: #{tpu_custom_call.1} parent=11 // pred_check_branch
          %148 = sbr.rel (%p146) target = $region20
        $region19: #{tpu_custom_call.1} parent=11 // pred_region
          _
        $region20: #{tpu_custom_call.1} parent=11 // pred_fallthru
          _
        // Predicated region
        $region21: #{tpu_custom_call.1} parent=11 // pred_check
          %p149 = pneg %p102
        $region22: #{tpu_custom_call.1} parent=11 // pred_check_branch
          %151 = sbr.rel (%p149) target = $region24
        $region23: #{tpu_custom_call.1} parent=11 // pred_region
          _
        $region24: #{tpu_custom_call.1} parent=11 // pred_fallthru
          _
      $region12: #{tpu_custom_call.1} parent=5 // pred_fallthru
        _
      %p152 = scmp.lt.s32.totalorder %s13, 2
      // Predicated region
      $region25: #{tpu_custom_call.1} parent=5 // pred_check
        %p153 = pneg %p152
      $region26: #{tpu_custom_call.1} parent=5 // pred_check_branch
        %155 = sbr.rel (%p153) target = $region28
      $region27: #{tpu_custom_call.1} parent=5 // pred_region
        // Predicated region
        $region29: #{tpu_custom_call.1} parent=27 // pred_check
          %p156 = pneg %p33
        $region30: #{tpu_custom_call.1} parent=27 // pred_check_branch
          %158 = sbr.rel (%p156) target = $region32
        $region31: #{tpu_custom_call.1} parent=27 // pred_region
          %p159 = scmp.lt.s32.totalorder %s13, 1
          %s160 = scalar_select %p159, %s13, 1
          %s161 = smul.addr %s160, 2
          %s162 = smul.addr %s161, 4
          %s163 = scalar_lea.vmem %s0, %s162
        $region32: #{tpu_custom_call.1} parent=27 // pred_fallthru
          _
      $region28: #{tpu_custom_call.1} parent=5 // pred_fallthru
        _
      %p164 = scmp.le.s32.totalorder 1, %s13
      %p165 = scmp.lt.s32.totalorder %s13, 3
      %p166 = pnand %p164, %p165
      %p167 = pneg %p166
      // Predicated region
      $region33: #{tpu_custom_call.1} parent=5 // pred_check
        _
      $region34: #{tpu_custom_call.1} parent=5 // pred_check_branch
        %169 = sbr.rel (%p166) target = $region36
      $region35: #{tpu_custom_call.1} parent=5 // pred_region
        %s170 = ssub.s32 %s13, 1
        %p171 = scmp.lt.s32.totalorder %s18, 1
        %s172 = scalar_select %p171, %s18, 1
        %s173 = smul.addr %s172, 2
        %s174 = smul.addr %s173, 4
        %s175 = scalar_lea.vmem %s0, %s174
        %p176 = pneg %p39
        %p177 = pneg %p36
        %p178 = pneg %p60
        %p179 = pneg %p57
        %p180 = pneg %p81
        %p181 = pneg %p78
        %p182 = pneg %p102
        %p183 = pneg %p99
        %p184 = pneg %p128
        %p185 = pneg %p125
        %s186 = sand.u32 %s115, 1
        %s187 = scalar_lea.sflag [#allocation3], %s186
        %s188 = sand.u32 %s115, 1
        %s189 = smul.addr %s188, 8
        %s190 = scalar_lea.vmem [#allocation2], %s189
        %p191 = scmp.lt.s32.totalorder %s18, 1
        %s192 = scalar_select %p191, %s18, 1
        %s193 = smul.addr %s192, 2
        %s194 = smul.addr %s193, 4
        %s195 = scalar_lea.vmem %s0, %s194
        %v196 = vld [vmem:[%s195] sm:$0xff]
        %v197 = vld [vmem:[%s1] sm:$0xff]
        %v198 = vld [vmem:[%s1 + $0x8] sm:$0xff]
        %v199 = vld [vmem:[%s1 + $0x10] sm:$0xff]
        %v200 = vld [vmem:[%s1 + $0x18] sm:$0xff]
        %v201 = vld [vmem:[%s1 + $0x20] sm:$0xff]
        %v202 = vld [vmem:[%s1 + $0x28] sm:$0xff]
        %v203 = vld [vmem:[%s1 + $0x30] sm:$0xff]
        %v204 = vld [vmem:[%s1 + $0x38] sm:$0xff]
        %v205 = vld [vmem:[%s1 + $0x40] sm:$0xff]
        %v206 = vld [vmem:[%s1 + $0x48] sm:$0xff]
        %v207 = vld [vmem:[%s1 + $0x50] sm:$0xff]
        %v208 = vld [vmem:[%s1 + $0x58] sm:$0xff]
        %v209 = vld [vmem:[%s1 + $0x60] sm:$0xff]
        %v210 = vld [vmem:[%s1 + $0x68] sm:$0xff]
        %v211 = vld [vmem:[%s1 + $0x70] sm:$0xff]
        %v212 = vld [vmem:[%s1 + $0x78] sm:$0xff]
        %v213 = vld [vmem:[%s1 + $0x80] sm:$0xff]
        %v214 = vld [vmem:[%s1 + $0x88] sm:$0xff]
        %v215 = vld [vmem:[%s1 + $0x90] sm:$0xff]
        %v216 = vld [vmem:[%s1 + $0x98] sm:$0xff]
        %v217 = vld [vmem:[%s1 + $0xa0] sm:$0xff]
        %v218 = vld [vmem:[%s1 + $0xa8] sm:$0xff]
        %v219 = vld [vmem:[%s1 + $0xb0] sm:$0xff]
        %v220 = vld [vmem:[%s1 + $0xb8] sm:$0xff]
        %v221 = vld [vmem:[%s1 + $0xc0] sm:$0xff]
        %v222 = vld [vmem:[%s1 + $0xc8] sm:$0xff]
        %v223 = vld [vmem:[%s1 + $0xd0] sm:$0xff]
        %v224 = vld [vmem:[%s1 + $0xd8] sm:$0xff]
        %v225 = vld [vmem:[%s1 + $0xe0] sm:$0xff]
        %v226 = vld [vmem:[%s1 + $0xe8] sm:$0xff]
        %v227 = vld [vmem:[%s1 + $0xf0] sm:$0xff]
        %v228 = vld [vmem:[%s1 + $0xf8] sm:$0xff]
        %v229 = vld [vmem:[%s1 + $0x100] sm:$0xff]
        %v230 = vld [vmem:[%s1 + $0x108] sm:$0xff]
        %v231 = vld [vmem:[%s1 + $0x110] sm:$0xff]
        %v232 = vld [vmem:[%s1 + $0x118] sm:$0xff]
        %v233 = vld [vmem:[%s1 + $0x120] sm:$0xff]
        %v234 = vld [vmem:[%s1 + $0x128] sm:$0xff]
        %v235 = vld [vmem:[%s1 + $0x130] sm:$0xff]
        %v236 = vld [vmem:[%s1 + $0x138] sm:$0xff]
        %v237 = vld [vmem:[%s1 + $0x140] sm:$0xff]
        %v238 = vld [vmem:[%s1 + $0x148] sm:$0xff]
        %v239 = vld [vmem:[%s1 + $0x150] sm:$0xff]
        %v240 = vld [vmem:[%s1 + $0x158] sm:$0xff]
        %v241 = vld [vmem:[%s1 + $0x160] sm:$0xff]
        %v242 = vld [vmem:[%s1 + $0x168] sm:$0xff]
        %v243 = vld [vmem:[%s1 + $0x170] sm:$0xff]
        %v244 = vld [vmem:[%s1 + $0x178] sm:$0xff]
        %246 = vst [vmem:[#allocation1] ss:$2 sm:$0xff] %v196
        %v247 = vld.sshfl [vmem:[#allocation1] sm:$0xff pattern:$0x75316420]
        %v248 = vld.sshfl [vmem:[#allocation1 + $0x8] sm:$0xff pattern:$0x75316420]
        %vm249 = vcmask 31744
        %v251 = vsel %vm249, %v197, 0
        %v254 = vsel %vm249, %v198, 0
        %v257 = vsel %vm249, %v199, 0
        %v260 = vsel %vm249, %v200, 0
        %v263 = vsel %vm249, %v201, 0
        %v266 = vsel %vm249, %v202, 0
        %v269 = vsel %vm249, %v203, 0
        %v272 = vsel %vm249, %v204, 0
        %v275 = vsel %vm249, %v205, 0
        %v278 = vsel %vm249, %v206, 0
        %v281 = vsel %vm249, %v207, 0
        %v284 = vsel %vm249, %v208, 0
        %v287 = vsel %vm249, %v209, 0
        %v290 = vsel %vm249, %v210, 0
        %v293 = vsel %vm249, %v211, 0
        %v296 = vsel %vm249, %v212, 0
        %v299 = vsel %vm249, %v213, 0
        %v302 = vsel %vm249, %v214, 0
        %v305 = vsel %vm249, %v215, 0
        %v308 = vsel %vm249, %v216, 0
        %v311 = vsel %vm249, %v217, 0
        %v314 = vsel %vm249, %v218, 0
        %v317 = vsel %vm249, %v219, 0
        %v320 = vsel %vm249, %v220, 0
        %v323 = vsel %vm249, %v221, 0
        %v326 = vsel %vm249, %v222, 0
        %v329 = vsel %vm249, %v223, 0
        %v332 = vsel %vm249, %v224, 0
        %v335 = vsel %vm249, %v225, 0
        %v338 = vsel %vm249, %v226, 0
        %v341 = vsel %vm249, %v227, 0
        %v344 = vsel %vm249, %v228, 0
        %v347 = vsel %vm249, %v229, 0
        %v350 = vsel %vm249, %v230, 0
        %v353 = vsel %vm249, %v231, 0
        %v356 = vsel %vm249, %v232, 0
        %v359 = vsel %vm249, %v233, 0
        %v362 = vsel %vm249, %v234, 0
        %v365 = vsel %vm249, %v235, 0
        %v368 = vsel %vm249, %v236, 0
        %v371 = vsel %vm249, %v237, 0
        %v374 = vsel %vm249, %v238, 0
        %v377 = vsel %vm249, %v239, 0
        %v380 = vsel %vm249, %v240, 0
        %v383 = vsel %vm249, %v241, 0
        %v386 = vsel %vm249, %v242, 0
        %v389 = vsel %vm249, %v243, 0
        %v392 = vsel %vm249, %v244, 0
        %vm394 = vcmask 1043456
        %v395 = vsel %vm394, %v247, 0
        %v397 = vsel %vm394, %v248, 0
        %399 = vmatpush.msra.mxu0 0.0
        %400 = vmatpush.msra.mxu0 0.0
        %401 = vmatpush.msra.mxu0 0.0
        %402 = vmatpush.msra.mxu0 0.0
        %403 = vmatpush.msra.mxu0 0.0
        %404 = vmatpush.msra.mxu0 0.0
        %405 = vmatpush.msra.mxu0 0.0
        %406 = vmatpush.msra.mxu0 0.0
        %407 = vmatpush.msra.mxu0 0.0
        %408 = vmatpush.msra.mxu0 0.0
        %409 = vmatpush.msra.mxu0 0.0
        %410 = vmatpush.msra.mxu0 0.0
        %411 = vmatpush.msra.mxu0 0.0
        %412 = vmatpush.msra.mxu0 0.0
        %413 = vmatpush.msra.mxu0 0.0
        %414 = vmatpush.msra.mxu0 %v395
        %415 = vmatmul.f32.gmra.mxu0 %v251
        %v416 = vpop.f32.mrf.mxu0
        %v417 = vadd.f32 0.0, %v416
        %418 = vmatmul.f32.gmra.mxu0 %v254
        %v419 = vpop.f32.mrf.mxu0
        %v420 = vadd.f32 0.0, %v419
        %421 = vmatmul.f32.gmra.mxu0 %v257
        %v422 = vpop.f32.mrf.mxu0
        %v423 = vadd.f32 0.0, %v422
        %424 = vmatmul.f32.gmra.mxu0 %v260
        %v425 = vpop.f32.mrf.mxu0
        %v426 = vadd.f32 0.0, %v425
        %427 = vmatmul.f32.gmra.mxu0 %v263
        %v428 = vpop.f32.mrf.mxu0
        %v429 = vadd.f32 0.0, %v428
        %430 = vmatmul.f32.gmra.mxu0 %v266
        %v431 = vpop.f32.mrf.mxu0
        %v432 = vadd.f32 0.0, %v431
        %433 = vmatmul.f32.gmra.mxu0 %v269
        %v434 = vpop.f32.mrf.mxu0
        %v435 = vadd.f32 0.0, %v434
        %436 = vmatmul.f32.gmra.mxu0 %v272
        %v437 = vpop.f32.mrf.mxu0
        %v438 = vadd.f32 0.0, %v437
        %439 = vmatmul.f32.gmra.mxu0 %v275
        %v440 = vpop.f32.mrf.mxu0
        %v441 = vadd.f32 0.0, %v440
        %442 = vmatmul.f32.gmra.mxu0 %v278
        %v443 = vpop.f32.mrf.mxu0
        %v444 = vadd.f32 0.0, %v443
        %445 = vmatmul.f32.gmra.mxu0 %v281
        %v446 = vpop.f32.mrf.mxu0
        %v447 = vadd.f32 0.0, %v446
        %448 = vmatmul.f32.gmra.mxu0 %v284
        %v449 = vpop.f32.mrf.mxu0
        %v450 = vadd.f32 0.0, %v449
        %451 = vmatmul.f32.gmra.mxu0 %v287
        %v452 = vpop.f32.mrf.mxu0
        %v453 = vadd.f32 0.0, %v452
        %454 = vmatmul.f32.gmra.mxu0 %v290
        %v455 = vpop.f32.mrf.mxu0
        %v456 = vadd.f32 0.0, %v455
        %457 = vmatmul.f32.gmra.mxu0 %v293
        %v458 = vpop.f32.mrf.mxu0
        %v459 = vadd.f32 0.0, %v458
        %460 = vmatmul.f32.gmra.mxu0 %v296
        %v461 = vpop.f32.mrf.mxu0
        %v462 = vadd.f32 0.0, %v461
        %463 = vmatmul.f32.gmra.mxu0 %v299
        %v464 = vpop.f32.mrf.mxu0
        %v465 = vadd.f32 0.0, %v464
        %466 = vmatmul.f32.gmra.mxu0 %v302
        %v467 = vpop.f32.mrf.mxu0
        %v468 = vadd.f32 0.0, %v467
        %469 = vmatmul.f32.gmra.mxu0 %v305
        %v470 = vpop.f32.mrf.mxu0
        %v471 = vadd.f32 0.0, %v470
        %472 = vmatmul.f32.gmra.mxu0 %v308
        %v473 = vpop.f32.mrf.mxu0
        %v474 = vadd.f32 0.0, %v473
        %475 = vmatmul.f32.gmra.mxu0 %v311
        %v476 = vpop.f32.mrf.mxu0
        %v477 = vadd.f32 0.0, %v476
        %478 = vmatmul.f32.gmra.mxu0 %v314
        %v479 = vpop.f32.mrf.mxu0
        %v480 = vadd.f32 0.0, %v479
        %481 = vmatmul.f32.gmra.mxu0 %v317
        %v482 = vpop.f32.mrf.mxu0
        %v483 = vadd.f32 0.0, %v482
        %484 = vmatmul.f32.gmra.mxu0 %v320
        %v485 = vpop.f32.mrf.mxu0
        %v486 = vadd.f32 0.0, %v485
        %487 = vmatmul.f32.gmra.mxu0 %v323
        %v488 = vpop.f32.mrf.mxu0
        %v489 = vadd.f32 0.0, %v488
        %490 = vmatmul.f32.gmra.mxu0 %v326
        %v491 = vpop.f32.mrf.mxu0
        %v492 = vadd.f32 0.0, %v491
        %493 = vmatmul.f32.gmra.mxu0 %v329
        %v494 = vpop.f32.mrf.mxu0
        %v495 = vadd.f32 0.0, %v494
        %496 = vmatmul.f32.gmra.mxu0 %v332
        %v497 = vpop.f32.mrf.mxu0
        %v498 = vadd.f32 0.0, %v497
        %499 = vmatmul.f32.gmra.mxu0 %v335
        %v500 = vpop.f32.mrf.mxu0
        %v501 = vadd.f32 0.0, %v500
        %502 = vmatmul.f32.gmra.mxu0 %v338
        %v503 = vpop.f32.mrf.mxu0
        %v504 = vadd.f32 0.0, %v503
        %505 = vmatmul.f32.gmra.mxu0 %v341
        %v506 = vpop.f32.mrf.mxu0
        %v507 = vadd.f32 0.0, %v506
        %508 = vmatmul.f32.gmra.mxu0 %v344
        %v509 = vpop.f32.mrf.mxu0
        %v510 = vadd.f32 0.0, %v509
        %511 = vmatmul.f32.gmra.mxu0 %v347
        %v512 = vpop.f32.mrf.mxu0
        %v513 = vadd.f32 0.0, %v512
        %514 = vmatmul.f32.gmra.mxu0 %v350
        %v515 = vpop.f32.mrf.mxu0
        %v516 = vadd.f32 0.0, %v515
        %517 = vmatmul.f32.gmra.mxu0 %v353
        %v518 = vpop.f32.mrf.mxu0
        %v519 = vadd.f32 0.0, %v518
        %520 = vmatmul.f32.gmra.mxu0 %v356
        %v521 = vpop.f32.mrf.mxu0
        %v522 = vadd.f32 0.0, %v521
        %523 = vmatmul.f32.gmra.mxu0 %v359
        %v524 = vpop.f32.mrf.mxu0
        %v525 = vadd.f32 0.0, %v524
        %526 = vmatmul.f32.gmra.mxu0 %v362
        %v527 = vpop.f32.mrf.mxu0
        %v528 = vadd.f32 0.0, %v527
        %529 = vmatmul.f32.gmra.mxu0 %v365
        %v530 = vpop.f32.mrf.mxu0
        %v531 = vadd.f32 0.0, %v530
        %532 = vmatmul.f32.gmra.mxu0 %v368
        %v533 = vpop.f32.mrf.mxu0
        %v534 = vadd.f32 0.0, %v533
        %535 = vmatmul.f32.gmra.mxu0 %v371
        %v536 = vpop.f32.mrf.mxu0
        %v537 = vadd.f32 0.0, %v536
        %538 = vmatmul.f32.gmra.mxu0 %v374
        %v539 = vpop.f32.mrf.mxu0
        %v540 = vadd.f32 0.0, %v539
        %541 = vmatmul.f32.gmra.mxu0 %v377
        %v542 = vpop.f32.mrf.mxu0
        %v543 = vadd.f32 0.0, %v542
        %544 = vmatmul.f32.gmra.mxu0 %v380
        %v545 = vpop.f32.mrf.mxu0
        %v546 = vadd.f32 0.0, %v545
        %547 = vmatmul.f32.gmra.mxu0 %v383
        %v548 = vpop.f32.mrf.mxu0
        %v549 = vadd.f32 0.0, %v548
        %550 = vmatmul.f32.gmra.mxu0 %v386
        %v551 = vpop.f32.mrf.mxu0
        %v552 = vadd.f32 0.0, %v551
        %553 = vmatmul.f32.gmra.mxu0 %v389
        %v554 = vpop.f32.mrf.mxu0
        %v555 = vadd.f32 0.0, %v554
        %556 = vmatmul.f32.gmra.mxu0 %v392
        %v557 = vpop.f32.mrf.mxu0
        %v558 = vadd.f32 0.0, %v557
        %559 = vdwg.mxu0
        %560 = vmatpush.msra.mxu0 0.0
        %561 = vmatpush.msra.mxu0 0.0
        %562 = vmatpush.msra.mxu0 0.0
        %563 = vmatpush.msra.mxu0 0.0
        %564 = vmatpush.msra.mxu0 0.0
        %565 = vmatpush.msra.mxu0 0.0
        %566 = vmatpush.msra.mxu0 0.0
        %567 = vmatpush.msra.mxu0 0.0
        %568 = vmatpush.msra.mxu0 0.0
        %569 = vmatpush.msra.mxu0 0.0
        %570 = vmatpush.msra.mxu0 0.0
        %571 = vmatpush.msra.mxu0 0.0
        %572 = vmatpush.msra.mxu0 0.0
        %573 = vmatpush.msra.mxu0 0.0
        %574 = vmatpush.msra.mxu0 0.0
        %575 = vmatpush.msra.mxu0 %v397
        %576 = vmatmul.f32.gmra.mxu0 %v251
        %v577 = vpop.f32.mrf.mxu0
        %v578 = vadd.f32 0.0, %v577
        %579 = vmatmul.f32.gmra.mxu0 %v254
        %v580 = vpop.f32.mrf.mxu0
        %v581 = vadd.f32 0.0, %v580
        %582 = vmatmul.f32.gmra.mxu0 %v257
        %v583 = vpop.f32.mrf.mxu0
        %v584 = vadd.f32 0.0, %v583
        %585 = vmatmul.f32.gmra.mxu0 %v260
        %v586 = vpop.f32.mrf.mxu0
        %v587 = vadd.f32 0.0, %v586
        %588 = vmatmul.f32.gmra.mxu0 %v263
        %v589 = vpop.f32.mrf.mxu0
        %v590 = vadd.f32 0.0, %v589
        %591 = vmatmul.f32.gmra.mxu0 %v266
        %v592 = vpop.f32.mrf.mxu0
        %v593 = vadd.f32 0.0, %v592
        %594 = vmatmul.f32.gmra.mxu0 %v269
        %v595 = vpop.f32.mrf.mxu0
        %v596 = vadd.f32 0.0, %v595
        %597 = vmatmul.f32.gmra.mxu0 %v272
        %v598 = vpop.f32.mrf.mxu0
        %v599 = vadd.f32 0.0, %v598
        %600 = vmatmul.f32.gmra.mxu0 %v275
        %v601 = vpop.f32.mrf.mxu0
        %v602 = vadd.f32 0.0, %v601
        %603 = vmatmul.f32.gmra.mxu0 %v278
        %v604 = vpop.f32.mrf.mxu0
        %v605 = vadd.f32 0.0, %v604
        %606 = vmatmul.f32.gmra.mxu0 %v281
        %v607 = vpop.f32.mrf.mxu0
        %v608 = vadd.f32 0.0, %v607
        %609 = vmatmul.f32.gmra.mxu0 %v284
        %v610 = vpop.f32.mrf.mxu0
        %v611 = vadd.f32 0.0, %v610
        %612 = vmatmul.f32.gmra.mxu0 %v287
        %v613 = vpop.f32.mrf.mxu0
        %v614 = vadd.f32 0.0, %v613
        %615 = vmatmul.f32.gmra.mxu0 %v290
        %v616 = vpop.f32.mrf.mxu0
        %v617 = vadd.f32 0.0, %v616
        %618 = vmatmul.f32.gmra.mxu0 %v293
        %v619 = vpop.f32.mrf.mxu0
        %v620 = vadd.f32 0.0, %v619
        %621 = vmatmul.f32.gmra.mxu0 %v296
        %v622 = vpop.f32.mrf.mxu0
        %v623 = vadd.f32 0.0, %v622
        %624 = vmatmul.f32.gmra.mxu0 %v299
        %v625 = vpop.f32.mrf.mxu0
        %v626 = vadd.f32 0.0, %v625
        %627 = vmatmul.f32.gmra.mxu0 %v302
        %v628 = vpop.f32.mrf.mxu0
        %v629 = vadd.f32 0.0, %v628
        %630 = vmatmul.f32.gmra.mxu0 %v305
        %v631 = vpop.f32.mrf.mxu0
        %v632 = vadd.f32 0.0, %v631
        %633 = vmatmul.f32.gmra.mxu0 %v308
        %v634 = vpop.f32.mrf.mxu0
        %v635 = vadd.f32 0.0, %v634
        %636 = vmatmul.f32.gmra.mxu0 %v311
        %v637 = vpop.f32.mrf.mxu0
        %v638 = vadd.f32 0.0, %v637
        %639 = vmatmul.f32.gmra.mxu0 %v314
        %v640 = vpop.f32.mrf.mxu0
        %v641 = vadd.f32 0.0, %v640
        %642 = vmatmul.f32.gmra.mxu0 %v317
        %v643 = vpop.f32.mrf.mxu0
        %v644 = vadd.f32 0.0, %v643
        %645 = vmatmul.f32.gmra.mxu0 %v320
        %v646 = vpop.f32.mrf.mxu0
        %v647 = vadd.f32 0.0, %v646
        %648 = vmatmul.f32.gmra.mxu0 %v323
        %v649 = vpop.f32.mrf.mxu0
        %v650 = vadd.f32 0.0, %v649
        %651 = vmatmul.f32.gmra.mxu0 %v326
        %v652 = vpop.f32.mrf.mxu0
        %v653 = vadd.f32 0.0, %v652
        %654 = vmatmul.f32.gmra.mxu0 %v329
        %v655 = vpop.f32.mrf.mxu0
        %v656 = vadd.f32 0.0, %v655
        %657 = vmatmul.f32.gmra.mxu0 %v332
        %v658 = vpop.f32.mrf.mxu0
        %v659 = vadd.f32 0.0, %v658
        %660 = vmatmul.f32.gmra.mxu0 %v335
        %v661 = vpop.f32.mrf.mxu0
        %v662 = vadd.f32 0.0, %v661
        %663 = vmatmul.f32.gmra.mxu0 %v338
        %v664 = vpop.f32.mrf.mxu0
        %v665 = vadd.f32 0.0, %v664
        %666 = vmatmul.f32.gmra.mxu0 %v341
        %v667 = vpop.f32.mrf.mxu0
        %v668 = vadd.f32 0.0, %v667
        %669 = vmatmul.f32.gmra.mxu0 %v344
        %v670 = vpop.f32.mrf.mxu0
        %v671 = vadd.f32 0.0, %v670
        %672 = vmatmul.f32.gmra.mxu0 %v347
        %v673 = vpop.f32.mrf.mxu0
        %v674 = vadd.f32 0.0, %v673
        %675 = vmatmul.f32.gmra.mxu0 %v350
        %v676 = vpop.f32.mrf.mxu0
        %v677 = vadd.f32 0.0, %v676
        %678 = vmatmul.f32.gmra.mxu0 %v353
        %v679 = vpop.f32.mrf.mxu0
        %v680 = vadd.f32 0.0, %v679
        %681 = vmatmul.f32.gmra.mxu0 %v356
        %v682 = vpop.f32.mrf.mxu0
        %v683 = vadd.f32 0.0, %v682
        %684 = vmatmul.f32.gmra.mxu0 %v359
        %v685 = vpop.f32.mrf.mxu0
        %v686 = vadd.f32 0.0, %v685
        %687 = vmatmul.f32.gmra.mxu0 %v362
        %v688 = vpop.f32.mrf.mxu0
        %v689 = vadd.f32 0.0, %v688
        %690 = vmatmul.f32.gmra.mxu0 %v365
        %v691 = vpop.f32.mrf.mxu0
        %v692 = vadd.f32 0.0, %v691
        %693 = vmatmul.f32.gmra.mxu0 %v368
        %v694 = vpop.f32.mrf.mxu0
        %v695 = vadd.f32 0.0, %v694
        %696 = vmatmul.f32.gmra.mxu0 %v371
        %v697 = vpop.f32.mrf.mxu0
        %v698 = vadd.f32 0.0, %v697
        %699 = vmatmul.f32.gmra.mxu0 %v374
        %v700 = vpop.f32.mrf.mxu0
        %v701 = vadd.f32 0.0, %v700
        %702 = vmatmul.f32.gmra.mxu0 %v377
        %v703 = vpop.f32.mrf.mxu0
        %v704 = vadd.f32 0.0, %v703
        %705 = vmatmul.f32.gmra.mxu0 %v380
        %v706 = vpop.f32.mrf.mxu0
        %v707 = vadd.f32 0.0, %v706
        %708 = vmatmul.f32.gmra.mxu0 %v383
        %v709 = vpop.f32.mrf.mxu0
        %v710 = vadd.f32 0.0, %v709
        %711 = vmatmul.f32.gmra.mxu0 %v386
        %v712 = vpop.f32.mrf.mxu0
        %v713 = vadd.f32 0.0, %v712
        %714 = vmatmul.f32.gmra.mxu0 %v389
        %v715 = vpop.f32.mrf.mxu0
        %v716 = vadd.f32 0.0, %v715
        %717 = vmatmul.f32.gmra.mxu0 %v392
        %v718 = vpop.f32.mrf.mxu0
        %v719 = vadd.f32 0.0, %v718
        %720 = vdwg.mxu0
        %v721 = vmax.f32 %v465, %v626
        %722 = vmax.xlane.f32.xlu0 %v721
        %v723 = vpop.xlane.xlu0 %722
        %v724 = vmax.f32 %v468, %v629
        %725 = vmax.xlane.f32.xlu0 %v724
        %v726 = vpop.xlane.xlu0 %725
        %v727 = vmax.f32 %v471, %v632
        %728 = vmax.xlane.f32.xlu0 %v727
        %v729 = vpop.xlane.xlu0 %728
        %v730 = vmax.f32 %v474, %v635
        %731 = vmax.xlane.f32.xlu0 %v730
        %v732 = vpop.xlane.xlu0 %731
        %v733 = vsub.f32 %v465, %v723
        %v734 = vsub.f32 %v626, %v723
        %v735 = vsub.f32 %v468, %v726
        %v736 = vsub.f32 %v629, %v726
        %v737 = vsub.f32 %v471, %v729
        %v738 = vsub.f32 %v632, %v729
        %v739 = vsub.f32 %v474, %v732
        %v740 = vsub.f32 %v635, %v732
        %v741 = vmul.f32 %v733, 1.442695
        %v742 = vpow.pop %v741
        %v743 = vmul.f32 %v734, 1.442695
        %v744 = vpow.pop %v743
        %v745 = vmul.f32 %v735, 1.442695
        %v746 = vpow.pop %v745
        %v747 = vmul.f32 %v736, 1.442695
        %v748 = vpow.pop %v747
        %v749 = vmul.f32 %v737, 1.442695
        %v750 = vpow.pop %v749
        %v751 = vmul.f32 %v738, 1.442695
        %v752 = vpow.pop %v751
        %v753 = vmul.f32 %v739, 1.442695
        %v754 = vpow.pop %v753
        %v755 = vmul.f32 %v740, 1.442695
        %v756 = vpow.pop %v755
        %v757 = vadd.f32 %v742, %v744
        %758 = vadd.xlane.f32.xlu0 %v757
        %v759 = vpop.xlane.xlu0 %758
        %v760 = vadd.f32 %v746, %v748
        %761 = vadd.xlane.f32.xlu0 %v760
        %v762 = vpop.xlane.xlu0 %761
        %v763 = vadd.f32 %v750, %v752
        %764 = vadd.xlane.f32.xlu0 %v763
        %v765 = vpop.xlane.xlu0 %764
        %v766 = vadd.f32 %v754, %v756
        %767 = vadd.xlane.f32.xlu0 %v766
        %v768 = vpop.xlane.xlu0 %767
        %v769 = vrcp.pop %v759
        %v770 = vmul.f32 %v759, %v769
        %v771 = vsub.f32 1.0, %v770
        %v772 = vmul.f32 %v769, %v771
        %v773 = vadd.f32 %v769, %v772
        %vm774 = vweird.f32 %v759
        %vm775 = vweird.f32 %v769
        %vm776 = vmor %vm774, %vm775
        %v777 = vsel %vm776, %v769, %v773
        %v778 = vand.u32 2147483647, %v759
        %vm779 = vcmp.eq.f32.partialorder %v778, 8.507059e+37
        %v780 = vand.u32 %v759, 2147483648
        %v781 = vor.u32 1.1754944e-38, %v780
        %v782 = vsel %vm779, %v781, %v777
        %v783 = vrcp.pop %v762
        %v784 = vmul.f32 %v762, %v783
        %v785 = vsub.f32 1.0, %v784
        %v786 = vmul.f32 %v783, %v785
        %v787 = vadd.f32 %v783, %v786
        %vm788 = vweird.f32 %v762
        %vm789 = vweird.f32 %v783
        %vm790 = vmor %vm788, %vm789
        %v791 = vsel %vm790, %v783, %v787
        %v792 = vand.u32 2147483647, %v762
        %vm793 = vcmp.eq.f32.partialorder %v792, 8.507059e+37
        %v794 = vand.u32 %v762, 2147483648
        %v795 = vor.u32 1.1754944e-38, %v794
        %v796 = vsel %vm793, %v795, %v791
        %v797 = vrcp.pop %v765
        %v798 = vmul.f32 %v765, %v797
        %v799 = vsub.f32 1.0, %v798
        %v800 = vmul.f32 %v797, %v799
        %v801 = vadd.f32 %v797, %v800
        %vm802 = vweird.f32 %v765
        %vm803 = vweird.f32 %v797
        %vm804 = vmor %vm802, %vm803
        %v805 = vsel %vm804, %v797, %v801
        %v806 = vand.u32 2147483647, %v765
        %vm807 = vcmp.eq.f32.partialorder %v806, 8.507059e+37
        %v808 = vand.u32 %v765, 2147483648
        %v809 = vor.u32 1.1754944e-38, %v808
        %v810 = vsel %vm807, %v809, %v805
        %v811 = vrcp.pop %v768
        %v812 = vmul.f32 %v768, %v811
        %v813 = vsub.f32 1.0, %v812
        %v814 = vmul.f32 %v811, %v813
        %v815 = vadd.f32 %v811, %v814
        %vm816 = vweird.f32 %v768
        %vm817 = vweird.f32 %v811
        %vm818 = vmor %vm816, %vm817
        %v819 = vsel %vm818, %v811, %v815
        %v820 = vand.u32 2147483647, %v768
        %vm821 = vcmp.eq.f32.partialorder %v820, 8.507059e+37
        %v822 = vand.u32 %v768, 2147483648
        %v823 = vor.u32 1.1754944e-38, %v822
        %v824 = vsel %vm821, %v823, %v819
        %v825 = vmul.f32 %v742, %v782
        %v826 = vmul.f32 %v744, %v782
        %v827 = vmul.f32 %v746, %v796
        %v828 = vmul.f32 %v748, %v796
        %v829 = vmul.f32 %v750, %v810
        %v830 = vmul.f32 %v752, %v810
        %v831 = vmul.f32 %v754, %v824
        %v832 = vmul.f32 %v756, %v824
        %833 = vmatpush.xpose.msra.mxu0 0.0
        %834 = vmatpush.xpose.msra.mxu0 0.0
        %835 = vmatpush.xpose.msra.mxu0 0.0
        %836 = vmatpush.xpose.msra.mxu0 0.0
        %837 = vmatpush.xpose.msra.mxu0 0.0
        %838 = vmatpush.xpose.msra.mxu0 0.0
        %839 = vmatpush.xpose.msra.mxu0 0.0
        %840 = vmatpush.xpose.msra.mxu0 0.0
        %841 = vmatpush.xpose.msra.mxu0 0.0
        %842 = vmatpush.xpose.msra.mxu0 0.0
        %843 = vmatpush.xpose.msra.mxu0 0.0
        %844 = vmatpush.xpose.msra.mxu0 0.0
        %845 = vmatpush.xpose.msra.mxu0 %v522
        %846 = vmatpush.xpose.msra.mxu0 %v519
        %847 = vmatpush.xpose.msra.mxu0 %v516
        %848 = vmatpush.xpose.msra.mxu0 %v513
        %849 = vmatmul.f32.gmra.mxu0 %v825
        %v850 = vpop.f32.mrf.mxu0
        %v851 = vadd.f32 0.0, %v850
        %852 = vmatmul.f32.gmra.mxu0 %v827
        %v853 = vpop.f32.mrf.mxu0
        %v854 = vadd.f32 0.0, %v853
        %855 = vmatmul.f32.gmra.mxu0 %v829
        %v856 = vpop.f32.mrf.mxu0
        %v857 = vadd.f32 0.0, %v856
        %858 = vmatmul.f32.gmra.mxu0 %v831
        %v859 = vpop.f32.mrf.mxu0
        %v860 = vadd.f32 0.0, %v859
        %861 = vdwg.mxu0
        %862 = vmatpush.xpose.msra.mxu0 0.0
        %863 = vmatpush.xpose.msra.mxu0 0.0
        %864 = vmatpush.xpose.msra.mxu0 0.0
        %865 = vmatpush.xpose.msra.mxu0 0.0
        %866 = vmatpush.xpose.msra.mxu0 0.0
        %867 = vmatpush.xpose.msra.mxu0 0.0
        %868 = vmatpush.xpose.msra.mxu0 0.0
        %869 = vmatpush.xpose.msra.mxu0 0.0
        %870 = vmatpush.xpose.msra.mxu0 0.0
        %871 = vmatpush.xpose.msra.mxu0 0.0
        %872 = vmatpush.xpose.msra.mxu0 0.0
        %873 = vmatpush.xpose.msra.mxu0 0.0
        %874 = vmatpush.xpose.msra.mxu0 %v683
        %875 = vmatpush.xpose.msra.mxu0 %v680
        %876 = vmatpush.xpose.msra.mxu0 %v677
        %877 = vmatpush.xpose.msra.mxu0 %v674
        %878 = vmatmul.f32.gmra.mxu0 %v826
        %v879 = vpop.f32.mrf.mxu0
        %v880 = vadd.f32 %v851, %v879
        %881 = vmatmul.f32.gmra.mxu0 %v828
        %v882 = vpop.f32.mrf.mxu0
        %v883 = vadd.f32 %v854, %v882
        %884 = vmatmul.f32.gmra.mxu0 %v830
        %v885 = vpop.f32.mrf.mxu0
        %v886 = vadd.f32 %v857, %v885
        %887 = vmatmul.f32.gmra.mxu0 %v832
        %v888 = vpop.f32.mrf.mxu0
        %v889 = vadd.f32 %v860, %v888
        %890 = vdwg.mxu0
        %891 = vxpose.xlu0.b32.start [1/16] %v880, 128
        %892 = vxpose.xlu0.b32.cont [2/16] %v883, 128
        %893 = vxpose.xlu0.b32.cont [3/16] %v886, 128
        %894 = vxpose.xlu0.b32.cont [4/16] %v889, 128
        %895 = vxpose.xlu0.b32.cont [5/16] 0.0, 128
        %896 = vxpose.xlu0.b32.cont [6/16] 0.0, 128
        %897 = vxpose.xlu0.b32.cont [7/16] 0.0, 128
        %898 = vxpose.xlu0.b32.cont [8/16] 0.0, 128
        %899 = vxpose.xlu0.b32.cont [9/16] 0.0, 128
        %900 = vxpose.xlu0.b32.cont [10/16] 0.0, 128
        %901 = vxpose.xlu0.b32.cont [11/16] 0.0, 128
        %902 = vxpose.xlu0.b32.cont [12/16] 0.0, 128
        %903 = vxpose.xlu0.b32.cont [13/16] 0.0, 128
        %904 = vxpose.xlu0.b32.cont [14/16] 0.0, 128
        %905 = vxpose.xlu0.b32.cont [15/16] 0.0, 128
        %906 = vxpose.xlu0.b32.end [16/16] 0.0, 128
        %v907 = vpop.trf.xlu0
        %v908 = vpop.trf.xlu0
        %v909 = vpop.trf.xlu0
        %v910 = vpop.trf.xlu0
        %v911 = vpop.trf.xlu0
        %v912 = vpop.trf.xlu0
        %v913 = vpop.trf.xlu0
        %v914 = vpop.trf.xlu0
        %v915 = vpop.trf.xlu0
        %v916 = vpop.trf.xlu0
        %v917 = vpop.trf.xlu0
        %v918 = vpop.trf.xlu0
        %v919 = vpop.trf.xlu0
        %v920 = vpop.trf.xlu0
        %v921 = vpop.trf.xlu0
        %v922 = vpop.trf.xlu0
        %vm923 = vcmask 261120
        %v925 = vsel %vm923, %v907, 0
        %v928 = vsel %vm923, %v908, 0
        %v931 = vsel %vm923, %v909, 0
        %v934 = vsel %vm923, %v910, 0
        %936 = vmatpush.msra.mxu0 0.0
        %937 = vmatpush.msra.mxu0 0.0
        %938 = vmatpush.msra.mxu0 0.0
        %939 = vmatpush.msra.mxu0 0.0
        %940 = vmatpush.msra.mxu0 0.0
        %941 = vmatpush.msra.mxu0 0.0
        %942 = vmatpush.msra.mxu0 0.0
        %943 = vmatpush.msra.mxu0 0.0
        %944 = vmatpush.msra.mxu0 0.0
        %945 = vmatpush.msra.mxu0 0.0
        %946 = vmatpush.msra.mxu0 0.0
        %947 = vmatpush.msra.mxu0 0.0
        %948 = vmatpush.msra.mxu0 %v426
        %949 = vmatpush.msra.mxu0 %v423
        %950 = vmatpush.msra.mxu0 %v420
        %951 = vmatpush.msra.mxu0 %v417
        %952 = vmatmul.f32.gmra.mxu0 %v925
        %v953 = vpop.f32.mrf.mxu0
        %v954 = vadd.f32 0.0, %v953
        %955 = vmatmul.f32.gmra.mxu0 %v928
        %v956 = vpop.f32.mrf.mxu0
        %v957 = vadd.f32 0.0, %v956
        %958 = vmatmul.f32.gmra.mxu0 %v931
        %v959 = vpop.f32.mrf.mxu0
        %v960 = vadd.f32 0.0, %v959
        %961 = vmatmul.f32.gmra.mxu0 %v934
        %v962 = vpop.f32.mrf.mxu0
        %v963 = vadd.f32 0.0, %v962
        %964 = vdwg.mxu0
        %965 = vmatpush.msra.mxu0 0.0
        %966 = vmatpush.msra.mxu0 0.0
        %967 = vmatpush.msra.mxu0 0.0
        %968 = vmatpush.msra.mxu0 0.0
        %969 = vmatpush.msra.mxu0 0.0
        %970 = vmatpush.msra.mxu0 0.0
        %971 = vmatpush.msra.mxu0 0.0
        %972 = vmatpush.msra.mxu0 0.0
        %973 = vmatpush.msra.mxu0 0.0
        %974 = vmatpush.msra.mxu0 0.0
        %975 = vmatpush.msra.mxu0 0.0
        %976 = vmatpush.msra.mxu0 0.0
        %977 = vmatpush.msra.mxu0 %v587
        %978 = vmatpush.msra.mxu0 %v584
        %979 = vmatpush.msra.mxu0 %v581
        %980 = vmatpush.msra.mxu0 %v578
        %981 = vmatmul.f32.gmra.mxu0 %v925
        %v982 = vpop.f32.mrf.mxu0
        %v983 = vadd.f32 0.0, %v982
        %984 = vmatmul.f32.gmra.mxu0 %v928
        %v985 = vpop.f32.mrf.mxu0
        %v986 = vadd.f32 0.0, %v985
        %987 = vmatmul.f32.gmra.mxu0 %v931
        %v988 = vpop.f32.mrf.mxu0
        %v989 = vadd.f32 0.0, %v988
        %990 = vmatmul.f32.gmra.mxu0 %v934
        %v991 = vpop.f32.mrf.mxu0
        %v992 = vadd.f32 0.0, %v991
        %993 = vdwg.mxu0
        %v994 = vmax.f32 %v477, %v638
        %995 = vmax.xlane.f32.xlu0 %v994
        %v996 = vpop.xlane.xlu0 %995
        %v997 = vmax.f32 %v480, %v641
        %998 = vmax.xlane.f32.xlu0 %v997
        %v999 = vpop.xlane.xlu0 %998
        %v1000 = vmax.f32 %v483, %v644
        %1001 = vmax.xlane.f32.xlu0 %v1000
        %v1002 = vpop.xlane.xlu0 %1001
        %v1003 = vmax.f32 %v486, %v647
        %1004 = vmax.xlane.f32.xlu0 %v1003
        %v1005 = vpop.xlane.xlu0 %1004
        %v1006 = vsub.f32 %v477, %v996
        %v1007 = vsub.f32 %v638, %v996
        %v1008 = vsub.f32 %v480, %v999
        %v1009 = vsub.f32 %v641, %v999
        %v1010 = vsub.f32 %v483, %v1002
        %v1011 = vsub.f32 %v644, %v1002
        %v1012 = vsub.f32 %v486, %v1005
        %v1013 = vsub.f32 %v647, %v1005
        %v1014 = vmul.f32 %v1006, 1.442695
        %v1015 = vpow.pop %v1014
        %v1016 = vmul.f32 %v1007, 1.442695
        %v1017 = vpow.pop %v1016
        %v1018 = vmul.f32 %v1008, 1.442695
        %v1019 = vpow.pop %v1018
        %v1020 = vmul.f32 %v1009, 1.442695
        %v1021 = vpow.pop %v1020
        %v1022 = vmul.f32 %v1010, 1.442695
        %v1023 = vpow.pop %v1022
        %v1024 = vmul.f32 %v1011, 1.442695
        %v1025 = vpow.pop %v1024
        %v1026 = vmul.f32 %v1012, 1.442695
        %v1027 = vpow.pop %v1026
        %v1028 = vmul.f32 %v1013, 1.442695
        %v1029 = vpow.pop %v1028
        %v1030 = vadd.f32 %v1015, %v1017
        %1031 = vadd.xlane.f32.xlu0 %v1030
        %v1032 = vpop.xlane.xlu0 %1031
        %v1033 = vadd.f32 %v1019, %v1021
        %1034 = vadd.xlane.f32.xlu0 %v1033
        %v1035 = vpop.xlane.xlu0 %1034
        %v1036 = vadd.f32 %v1023, %v1025
        %1037 = vadd.xlane.f32.xlu0 %v1036
        %v1038 = vpop.xlane.xlu0 %1037
        %v1039 = vadd.f32 %v1027, %v1029
        %1040 = vadd.xlane.f32.xlu0 %v1039
        %v1041 = vpop.xlane.xlu0 %1040
        %v1042 = vrcp.pop %v1032
        %v1043 = vmul.f32 %v1032, %v1042
        %v1044 = vsub.f32 1.0, %v1043
        %v1045 = vmul.f32 %v1042, %v1044
        %v1046 = vadd.f32 %v1042, %v1045
        %vm1047 = vweird.f32 %v1032
        %vm1048 = vweird.f32 %v1042
        %vm1049 = vmor %vm1047, %vm1048
        %v1050 = vsel %vm1049, %v1042, %v1046
        %v1051 = vand.u32 2147483647, %v1032
        %vm1052 = vcmp.eq.f32.partialorder %v1051, 8.507059e+37
        %v1053 = vand.u32 %v1032, 2147483648
        %v1054 = vor.u32 1.1754944e-38, %v1053
        %v1055 = vsel %vm1052, %v1054, %v1050
        %v1056 = vrcp.pop %v1035
        %v1057 = vmul.f32 %v1035, %v1056
        %v1058 = vsub.f32 1.0, %v1057
        %v1059 = vmul.f32 %v1056, %v1058
        %v1060 = vadd.f32 %v1056, %v1059
        %vm1061 = vweird.f32 %v1035
        %vm1062 = vweird.f32 %v1056
        %vm1063 = vmor %vm1061, %vm1062
        %v1064 = vsel %vm1063, %v1056, %v1060
        %v1065 = vand.u32 2147483647, %v1035
        %vm1066 = vcmp.eq.f32.partialorder %v1065, 8.507059e+37
        %v1067 = vand.u32 %v1035, 2147483648
        %v1068 = vor.u32 1.1754944e-38, %v1067
        %v1069 = vsel %vm1066, %v1068, %v1064
        %v1070 = vrcp.pop %v1038
        %v1071 = vmul.f32 %v1038, %v1070
        %v1072 = vsub.f32 1.0, %v1071
        %v1073 = vmul.f32 %v1070, %v1072
        %v1074 = vadd.f32 %v1070, %v1073
        %vm1075 = vweird.f32 %v1038
        %vm1076 = vweird.f32 %v1070
        %vm1077 = vmor %vm1075, %vm1076
        %v1078 = vsel %vm1077, %v1070, %v1074
        %v1079 = vand.u32 2147483647, %v1038
        %vm1080 = vcmp.eq.f32.partialorder %v1079, 8.507059e+37
        %v1081 = vand.u32 %v1038, 2147483648
        %v1082 = vor.u32 1.1754944e-38, %v1081
        %v1083 = vsel %vm1080, %v1082, %v1078
        %v1084 = vrcp.pop %v1041
        %v1085 = vmul.f32 %v1041, %v1084
        %v1086 = vsub.f32 1.0, %v1085
        %v1087 = vmul.f32 %v1084, %v1086
        %v1088 = vadd.f32 %v1084, %v1087
        %vm1089 = vweird.f32 %v1041
        %vm1090 = vweird.f32 %v1084
        %vm1091 = vmor %vm1089, %vm1090
        %v1092 = vsel %vm1091, %v1084, %v1088
        %v1093 = vand.u32 2147483647, %v1041
        %vm1094 = vcmp.eq.f32.partialorder %v1093, 8.507059e+37
        %v1095 = vand.u32 %v1041, 2147483648
        %v1096 = vor.u32 1.1754944e-38, %v1095
        %v1097 = vsel %vm1094, %v1096, %v1092
        %v1098 = vmul.f32 %v1015, %v1055
        %v1099 = vmul.f32 %v1017, %v1055
        %v1100 = vmul.f32 %v1019, %v1069
        %v1101 = vmul.f32 %v1021, %v1069
        %v1102 = vmul.f32 %v1023, %v1083
        %v1103 = vmul.f32 %v1025, %v1083
        %v1104 = vmul.f32 %v1027, %v1097
        %v1105 = vmul.f32 %v1029, %v1097
        %1106 = vmatpush.xpose.msra.mxu0 0.0
        %1107 = vmatpush.xpose.msra.mxu0 0.0
        %1108 = vmatpush.xpose.msra.mxu0 0.0
        %1109 = vmatpush.xpose.msra.mxu0 0.0
        %1110 = vmatpush.xpose.msra.mxu0 0.0
        %1111 = vmatpush.xpose.msra.mxu0 0.0
        %1112 = vmatpush.xpose.msra.mxu0 0.0
        %1113 = vmatpush.xpose.msra.mxu0 0.0
        %1114 = vmatpush.xpose.msra.mxu0 0.0
        %1115 = vmatpush.xpose.msra.mxu0 0.0
        %1116 = vmatpush.xpose.msra.mxu0 0.0
        %1117 = vmatpush.xpose.msra.mxu0 0.0
        %1118 = vmatpush.xpose.msra.mxu0 %v534
        %1119 = vmatpush.xpose.msra.mxu0 %v531
        %1120 = vmatpush.xpose.msra.mxu0 %v528
        %1121 = vmatpush.xpose.msra.mxu0 %v525
        %1122 = vmatmul.f32.gmra.mxu0 %v1098
        %v1123 = vpop.f32.mrf.mxu0
        %v1124 = vadd.f32 0.0, %v1123
        %1125 = vmatmul.f32.gmra.mxu0 %v1100
        %v1126 = vpop.f32.mrf.mxu0
        %v1127 = vadd.f32 0.0, %v1126
        %1128 = vmatmul.f32.gmra.mxu0 %v1102
        %v1129 = vpop.f32.mrf.mxu0
        %v1130 = vadd.f32 0.0, %v1129
        %1131 = vmatmul.f32.gmra.mxu0 %v1104
        %v1132 = vpop.f32.mrf.mxu0
        %v1133 = vadd.f32 0.0, %v1132
        %1134 = vdwg.mxu0
        %1135 = vmatpush.xpose.msra.mxu0 0.0
        %1136 = vmatpush.xpose.msra.mxu0 0.0
        %1137 = vmatpush.xpose.msra.mxu0 0.0
        %1138 = vmatpush.xpose.msra.mxu0 0.0
        %1139 = vmatpush.xpose.msra.mxu0 0.0
        %1140 = vmatpush.xpose.msra.mxu0 0.0
        %1141 = vmatpush.xpose.msra.mxu0 0.0
        %1142 = vmatpush.xpose.msra.mxu0 0.0
        %1143 = vmatpush.xpose.msra.mxu0 0.0
        %1144 = vmatpush.xpose.msra.mxu0 0.0
        %1145 = vmatpush.xpose.msra.mxu0 0.0
        %1146 = vmatpush.xpose.msra.mxu0 0.0
        %1147 = vmatpush.xpose.msra.mxu0 %v695
        %1148 = vmatpush.xpose.msra.mxu0 %v692
        %1149 = vmatpush.xpose.msra.mxu0 %v689
        %1150 = vmatpush.xpose.msra.mxu0 %v686
        %1151 = vmatmul.f32.gmra.mxu0 %v1099
        %v1152 = vpop.f32.mrf.mxu0
        %v1153 = vadd.f32 %v1124, %v1152
        %1154 = vmatmul.f32.gmra.mxu0 %v1101
        %v1155 = vpop.f32.mrf.mxu0
        %v1156 = vadd.f32 %v1127, %v1155
        %1157 = vmatmul.f32.gmra.mxu0 %v1103
        %v1158 = vpop.f32.mrf.mxu0
        %v1159 = vadd.f32 %v1130, %v1158
        %1160 = vmatmul.f32.gmra.mxu0 %v1105
        %v1161 = vpop.f32.mrf.mxu0
        %v1162 = vadd.f32 %v1133, %v1161
        %1163 = vdwg.mxu0
        %1164 = vxpose.xlu0.b32.start [1/16] %v1153, 128
        %1165 = vxpose.xlu0.b32.cont [2/16] %v1156, 128
        %1166 = vxpose.xlu0.b32.cont [3/16] %v1159, 128
        %1167 = vxpose.xlu0.b32.cont [4/16] %v1162, 128
        %1168 = vxpose.xlu0.b32.cont [5/16] 0.0, 128
        %1169 = vxpose.xlu0.b32.cont [6/16] 0.0, 128
        %1170 = vxpose.xlu0.b32.cont [7/16] 0.0, 128
        %1171 = vxpose.xlu0.b32.cont [8/16] 0.0, 128
        %1172 = vxpose.xlu0.b32.cont [9/16] 0.0, 128
        %1173 = vxpose.xlu0.b32.cont [10/16] 0.0, 128
        %1174 = vxpose.xlu0.b32.cont [11/16] 0.0, 128
        %1175 = vxpose.xlu0.b32.cont [12/16] 0.0, 128
        %1176 = vxpose.xlu0.b32.cont [13/16] 0.0, 128
        %1177 = vxpose.xlu0.b32.cont [14/16] 0.0, 128
        %1178 = vxpose.xlu0.b32.cont [15/16] 0.0, 128
        %1179 = vxpose.xlu0.b32.end [16/16] 0.0, 128
        %v1180 = vpop.trf.xlu0
        %v1181 = vpop.trf.xlu0
        %v1182 = vpop.trf.xlu0
        %v1183 = vpop.trf.xlu0
        %v1184 = vpop.trf.xlu0
        %v1185 = vpop.trf.xlu0
        %v1186 = vpop.trf.xlu0
        %v1187 = vpop.trf.xlu0
        %v1188 = vpop.trf.xlu0
        %v1189 = vpop.trf.xlu0
        %v1190 = vpop.trf.xlu0
        %v1191 = vpop.trf.xlu0
        %v1192 = vpop.trf.xlu0
        %v1193 = vpop.trf.xlu0
        %v1194 = vpop.trf.xlu0
        %v1195 = vpop.trf.xlu0
        %v1197 = vsel %vm923, %v1180, 0
        %v1200 = vsel %vm923, %v1181, 0
        %v1203 = vsel %vm923, %v1182, 0
        %v1206 = vsel %vm923, %v1183, 0
        %1208 = vmatpush.msra.mxu0 0.0
        %1209 = vmatpush.msra.mxu0 0.0
        %1210 = vmatpush.msra.mxu0 0.0
        %1211 = vmatpush.msra.mxu0 0.0
        %1212 = vmatpush.msra.mxu0 0.0
        %1213 = vmatpush.msra.mxu0 0.0
        %1214 = vmatpush.msra.mxu0 0.0
        %1215 = vmatpush.msra.mxu0 0.0
        %1216 = vmatpush.msra.mxu0 0.0
        %1217 = vmatpush.msra.mxu0 0.0
        %1218 = vmatpush.msra.mxu0 0.0
        %1219 = vmatpush.msra.mxu0 0.0
        %1220 = vmatpush.msra.mxu0 %v438
        %1221 = vmatpush.msra.mxu0 %v435
        %1222 = vmatpush.msra.mxu0 %v432
        %1223 = vmatpush.msra.mxu0 %v429
        %1224 = vmatmul.f32.gmra.mxu0 %v1197
        %v1225 = vpop.f32.mrf.mxu0
        %v1226 = vadd.f32 0.0, %v1225
        %1227 = vmatmul.f32.gmra.mxu0 %v1200
        %v1228 = vpop.f32.mrf.mxu0
        %v1229 = vadd.f32 0.0, %v1228
        %1230 = vmatmul.f32.gmra.mxu0 %v1203
        %v1231 = vpop.f32.mrf.mxu0
        %v1232 = vadd.f32 0.0, %v1231
        %1233 = vmatmul.f32.gmra.mxu0 %v1206
        %v1234 = vpop.f32.mrf.mxu0
        %v1235 = vadd.f32 0.0, %v1234
        %1236 = vdwg.mxu0
        %1237 = vmatpush.msra.mxu0 0.0
        %1238 = vmatpush.msra.mxu0 0.0
        %1239 = vmatpush.msra.mxu0 0.0
        %1240 = vmatpush.msra.mxu0 0.0
        %1241 = vmatpush.msra.mxu0 0.0
        %1242 = vmatpush.msra.mxu0 0.0
        %1243 = vmatpush.msra.mxu0 0.0
        %1244 = vmatpush.msra.mxu0 0.0
        %1245 = vmatpush.msra.mxu0 0.0
        %1246 = vmatpush.msra.mxu0 0.0
        %1247 = vmatpush.msra.mxu0 0.0
        %1248 = vmatpush.msra.mxu0 0.0
        %1249 = vmatpush.msra.mxu0 %v599
        %1250 = vmatpush.msra.mxu0 %v596
        %1251 = vmatpush.msra.mxu0 %v593
        %1252 = vmatpush.msra.mxu0 %v590
        %1253 = vmatmul.f32.gmra.mxu0 %v1197
        %v1254 = vpop.f32.mrf.mxu0
        %v1255 = vadd.f32 0.0, %v1254
        %1256 = vmatmul.f32.gmra.mxu0 %v1200
        %v1257 = vpop.f32.mrf.mxu0
        %v1258 = vadd.f32 0.0, %v1257
        %1259 = vmatmul.f32.gmra.mxu0 %v1203
        %v1260 = vpop.f32.mrf.mxu0
        %v1261 = vadd.f32 0.0, %v1260
        %1262 = vmatmul.f32.gmra.mxu0 %v1206
        %v1263 = vpop.f32.mrf.mxu0
        %v1264 = vadd.f32 0.0, %v1263
        %1265 = vdwg.mxu0
        %v1266 = vmax.f32 %v489, %v650
        %1267 = vmax.xlane.f32.xlu0 %v1266
        %v1268 = vpop.xlane.xlu0 %1267
        %v1269 = vmax.f32 %v492, %v653
        %1270 = vmax.xlane.f32.xlu0 %v1269
        %v1271 = vpop.xlane.xlu0 %1270
        %v1272 = vmax.f32 %v495, %v656
        %1273 = vmax.xlane.f32.xlu0 %v1272
        %v1274 = vpop.xlane.xlu0 %1273
        %v1275 = vmax.f32 %v498, %v659
        %1276 = vmax.xlane.f32.xlu0 %v1275
        %v1277 = vpop.xlane.xlu0 %1276
        %v1278 = vsub.f32 %v489, %v1268
        %v1279 = vsub.f32 %v650, %v1268
        %v1280 = vsub.f32 %v492, %v1271
        %v1281 = vsub.f32 %v653, %v1271
        %v1282 = vsub.f32 %v495, %v1274
        %v1283 = vsub.f32 %v656, %v1274
        %v1284 = vsub.f32 %v498, %v1277
        %v1285 = vsub.f32 %v659, %v1277
        %v1286 = vmul.f32 %v1278, 1.442695
        %v1287 = vpow.pop %v1286
        %v1288 = vmul.f32 %v1279, 1.442695
        %v1289 = vpow.pop %v1288
        %v1290 = vmul.f32 %v1280, 1.442695
        %v1291 = vpow.pop %v1290
        %v1292 = vmul.f32 %v1281, 1.442695
        %v1293 = vpow.pop %v1292
        %v1294 = vmul.f32 %v1282, 1.442695
        %v1295 = vpow.pop %v1294
        %v1296 = vmul.f32 %v1283, 1.442695
        %v1297 = vpow.pop %v1296
        %v1298 = vmul.f32 %v1284, 1.442695
        %v1299 = vpow.pop %v1298
        %v1300 = vmul.f32 %v1285, 1.442695
        %v1301 = vpow.pop %v1300
        %v1302 = vadd.f32 %v1287, %v1289
        %1303 = vadd.xlane.f32.xlu0 %v1302
        %v1304 = vpop.xlane.xlu0 %1303
        %v1305 = vadd.f32 %v1291, %v1293
        %1306 = vadd.xlane.f32.xlu0 %v1305
        %v1307 = vpop.xlane.xlu0 %1306
        %v1308 = vadd.f32 %v1295, %v1297
        %1309 = vadd.xlane.f32.xlu0 %v1308
        %v1310 = vpop.xlane.xlu0 %1309
        %v1311 = vadd.f32 %v1299, %v1301
        %1312 = vadd.xlane.f32.xlu0 %v1311
        %v1313 = vpop.xlane.xlu0 %1312
        %v1314 = vrcp.pop %v1304
        %v1315 = vmul.f32 %v1304, %v1314
        %v1316 = vsub.f32 1.0, %v1315
        %v1317 = vmul.f32 %v1314, %v1316
        %v1318 = vadd.f32 %v1314, %v1317
        %vm1319 = vweird.f32 %v1304
        %vm1320 = vweird.f32 %v1314
        %vm1321 = vmor %vm1319, %vm1320
        %v1322 = vsel %vm1321, %v1314, %v1318
        %v1323 = vand.u32 2147483647, %v1304
        %vm1324 = vcmp.eq.f32.partialorder %v1323, 8.507059e+37
        %v1325 = vand.u32 %v1304, 2147483648
        %v1326 = vor.u32 1.1754944e-38, %v1325
        %v1327 = vsel %vm1324, %v1326, %v1322
        %v1328 = vrcp.pop %v1307
        %v1329 = vmul.f32 %v1307, %v1328
        %v1330 = vsub.f32 1.0, %v1329
        %v1331 = vmul.f32 %v1328, %v1330
        %v1332 = vadd.f32 %v1328, %v1331
        %vm1333 = vweird.f32 %v1307
        %vm1334 = vweird.f32 %v1328
        %vm1335 = vmor %vm1333, %vm1334
        %v1336 = vsel %vm1335, %v1328, %v1332
        %v1337 = vand.u32 2147483647, %v1307
        %vm1338 = vcmp.eq.f32.partialorder %v1337, 8.507059e+37
        %v1339 = vand.u32 %v1307, 2147483648
        %v1340 = vor.u32 1.1754944e-38, %v1339
        %v1341 = vsel %vm1338, %v1340, %v1336
        %v1342 = vrcp.pop %v1310
        %v1343 = vmul.f32 %v1310, %v1342
        %v1344 = vsub.f32 1.0, %v1343
        %v1345 = vmul.f32 %v1342, %v1344
        %v1346 = vadd.f32 %v1342, %v1345
        %vm1347 = vweird.f32 %v1310
        %vm1348 = vweird.f32 %v1342
        %vm1349 = vmor %vm1347, %vm1348
        %v1350 = vsel %vm1349, %v1342, %v1346
        %v1351 = vand.u32 2147483647, %v1310
        %vm1352 = vcmp.eq.f32.partialorder %v1351, 8.507059e+37
        %v1353 = vand.u32 %v1310, 2147483648
        %v1354 = vor.u32 1.1754944e-38, %v1353
        %v1355 = vsel %vm1352, %v1354, %v1350
        %v1356 = vrcp.pop %v1313
        %v1357 = vmul.f32 %v1313, %v1356
        %v1358 = vsub.f32 1.0, %v1357
        %v1359 = vmul.f32 %v1356, %v1358
        %v1360 = vadd.f32 %v1356, %v1359
        %vm1361 = vweird.f32 %v1313
        %vm1362 = vweird.f32 %v1356
        %vm1363 = vmor %vm1361, %vm1362
        %v1364 = vsel %vm1363, %v1356, %v1360
        %v1365 = vand.u32 2147483647, %v1313
        %vm1366 = vcmp.eq.f32.partialorder %v1365, 8.507059e+37
        %v1367 = vand.u32 %v1313, 2147483648
        %v1368 = vor.u32 1.1754944e-38, %v1367
        %v1369 = vsel %vm1366, %v1368, %v1364
        %v1370 = vmul.f32 %v1287, %v1327
        %v1371 = vmul.f32 %v1289, %v1327
        %v1372 = vmul.f32 %v1291, %v1341
        %v1373 = vmul.f32 %v1293, %v1341
        %v1374 = vmul.f32 %v1295, %v1355
        %v1375 = vmul.f32 %v1297, %v1355
        %v1376 = vmul.f32 %v1299, %v1369
        %v1377 = vmul.f32 %v1301, %v1369
        %1378 = vmatpush.xpose.msra.mxu0 0.0
        %1379 = vmatpush.xpose.msra.mxu0 0.0
        %1380 = vmatpush.xpose.msra.mxu0 0.0
        %1381 = vmatpush.xpose.msra.mxu0 0.0
        %1382 = vmatpush.xpose.msra.mxu0 0.0
        %1383 = vmatpush.xpose.msra.mxu0 0.0
        %1384 = vmatpush.xpose.msra.mxu0 0.0
        %1385 = vmatpush.xpose.msra.mxu0 0.0
        %1386 = vmatpush.xpose.msra.mxu0 0.0
        %1387 = vmatpush.xpose.msra.mxu0 0.0
        %1388 = vmatpush.xpose.msra.mxu0 0.0
        %1389 = vmatpush.xpose.msra.mxu0 0.0
        %1390 = vmatpush.xpose.msra.mxu0 %v546
        %1391 = vmatpush.xpose.msra.mxu0 %v543
        %1392 = vmatpush.xpose.msra.mxu0 %v540
        %1393 = vmatpush.xpose.msra.mxu0 %v537
        %1394 = vmatmul.f32.gmra.mxu0 %v1370
        %v1395 = vpop.f32.mrf.mxu0
        %v1396 = vadd.f32 0.0, %v1395
        %1397 = vmatmul.f32.gmra.mxu0 %v1372
        %v1398 = vpop.f32.mrf.mxu0
        %v1399 = vadd.f32 0.0, %v1398
        %1400 = vmatmul.f32.gmra.mxu0 %v1374
        %v1401 = vpop.f32.mrf.mxu0
        %v1402 = vadd.f32 0.0, %v1401
        %1403 = vmatmul.f32.gmra.mxu0 %v1376
        %v1404 = vpop.f32.mrf.mxu0
        %v1405 = vadd.f32 0.0, %v1404
        %1406 = vdwg.mxu0
        %1407 = vmatpush.xpose.msra.mxu0 0.0
        %1408 = vmatpush.xpose.msra.mxu0 0.0
        %1409 = vmatpush.xpose.msra.mxu0 0.0
        %1410 = vmatpush.xpose.msra.mxu0 0.0
        %1411 = vmatpush.xpose.msra.mxu0 0.0
        %1412 = vmatpush.xpose.msra.mxu0 0.0
        %1413 = vmatpush.xpose.msra.mxu0 0.0
        %1414 = vmatpush.xpose.msra.mxu0 0.0
        %1415 = vmatpush.xpose.msra.mxu0 0.0
        %1416 = vmatpush.xpose.msra.mxu0 0.0
        %1417 = vmatpush.xpose.msra.mxu0 0.0
        %1418 = vmatpush.xpose.msra.mxu0 0.0
        %1419 = vmatpush.xpose.msra.mxu0 %v707
        %1420 = vmatpush.xpose.msra.mxu0 %v704
        %1421 = vmatpush.xpose.msra.mxu0 %v701
        %1422 = vmatpush.xpose.msra.mxu0 %v698
        %1423 = vmatmul.f32.gmra.mxu0 %v1371
        %v1424 = vpop.f32.mrf.mxu0
        %v1425 = vadd.f32 %v1396, %v1424
        %1426 = vmatmul.f32.gmra.mxu0 %v1373
        %v1427 = vpop.f32.mrf.mxu0
        %v1428 = vadd.f32 %v1399, %v1427
        %1429 = vmatmul.f32.gmra.mxu0 %v1375
        %v1430 = vpop.f32.mrf.mxu0
        %v1431 = vadd.f32 %v1402, %v1430
        %1432 = vmatmul.f32.gmra.mxu0 %v1377
        %v1433 = vpop.f32.mrf.mxu0
        %v1434 = vadd.f32 %v1405, %v1433
        %1435 = vdwg.mxu0
        %1436 = vxpose.xlu0.b32.start [1/16] %v1425, 128
        %1437 = vxpose.xlu0.b32.cont [2/16] %v1428, 128
        %1438 = vxpose.xlu0.b32.cont [3/16] %v1431, 128
        %1439 = vxpose.xlu0.b32.cont [4/16] %v1434, 128
        %1440 = vxpose.xlu0.b32.cont [5/16] 0.0, 128
        %1441 = vxpose.xlu0.b32.cont [6/16] 0.0, 128
        %1442 = vxpose.xlu0.b32.cont [7/16] 0.0, 128
        %1443 = vxpose.xlu0.b32.cont [8/16] 0.0, 128
        %1444 = vxpose.xlu0.b32.cont [9/16] 0.0, 128
        %1445 = vxpose.xlu0.b32.cont [10/16] 0.0, 128
        %1446 = vxpose.xlu0.b32.cont [11/16] 0.0, 128
        %1447 = vxpose.xlu0.b32.cont [12/16] 0.0, 128
        %1448 = vxpose.xlu0.b32.cont [13/16] 0.0, 128
        %1449 = vxpose.xlu0.b32.cont [14/16] 0.0, 128
        %1450 = vxpose.xlu0.b32.cont [15/16] 0.0, 128
        %1451 = vxpose.xlu0.b32.end [16/16] 0.0, 128
        %v1452 = vpop.trf.xlu0
        %v1453 = vpop.trf.xlu0
        %v1454 = vpop.trf.xlu0
        %v1455 = vpop.trf.xlu0
        %v1456 = vpop.trf.xlu0
        %v1457 = vpop.trf.xlu0
        %v1458 = vpop.trf.xlu0
        %v1459 = vpop.trf.xlu0
        %v1460 = vpop.trf.xlu0
        %v1461 = vpop.trf.xlu0
        %v1462 = vpop.trf.xlu0
        %v1463 = vpop.trf.xlu0
        %v1464 = vpop.trf.xlu0
        %v1465 = vpop.trf.xlu0
        %v1466 = vpop.trf.xlu0
        %v1467 = vpop.trf.xlu0
        %v1469 = vsel %vm923, %v1452, 0
        %v1472 = vsel %vm923, %v1453, 0
        %v1475 = vsel %vm923, %v1454, 0
        %v1478 = vsel %vm923, %v1455, 0
        %1480 = vmatpush.msra.mxu0 0.0
        %1481 = vmatpush.msra.mxu0 0.0
        %1482 = vmatpush.msra.mxu0 0.0
        %1483 = vmatpush.msra.mxu0 0.0
        %1484 = vmatpush.msra.mxu0 0.0
        %1485 = vmatpush.msra.mxu0 0.0
        %1486 = vmatpush.msra.mxu0 0.0
        %1487 = vmatpush.msra.mxu0 0.0
        %1488 = vmatpush.msra.mxu0 0.0
        %1489 = vmatpush.msra.mxu0 0.0
        %1490 = vmatpush.msra.mxu0 0.0
        %1491 = vmatpush.msra.mxu0 0.0
        %1492 = vmatpush.msra.mxu0 %v450
        %1493 = vmatpush.msra.mxu0 %v447
        %1494 = vmatpush.msra.mxu0 %v444
        %1495 = vmatpush.msra.mxu0 %v441
        %1496 = vmatmul.f32.gmra.mxu0 %v1469
        %v1497 = vpop.f32.mrf.mxu0
        %v1498 = vadd.f32 0.0, %v1497
        %1499 = vmatmul.f32.gmra.mxu0 %v1472
        %v1500 = vpop.f32.mrf.mxu0
        %v1501 = vadd.f32 0.0, %v1500
        %1502 = vmatmul.f32.gmra.mxu0 %v1475
        %v1503 = vpop.f32.mrf.mxu0
        %v1504 = vadd.f32 0.0, %v1503
        %1505 = vmatmul.f32.gmra.mxu0 %v1478
        %v1506 = vpop.f32.mrf.mxu0
        %v1507 = vadd.f32 0.0, %v1506
        %1508 = vdwg.mxu0
        %1509 = vmatpush.msra.mxu0 0.0
        %1510 = vmatpush.msra.mxu0 0.0
        %1511 = vmatpush.msra.mxu0 0.0
        %1512 = vmatpush.msra.mxu0 0.0
        %1513 = vmatpush.msra.mxu0 0.0
        %1514 = vmatpush.msra.mxu0 0.0
        %1515 = vmatpush.msra.mxu0 0.0
        %1516 = vmatpush.msra.mxu0 0.0
        %1517 = vmatpush.msra.mxu0 0.0
        %1518 = vmatpush.msra.mxu0 0.0
        %1519 = vmatpush.msra.mxu0 0.0
        %1520 = vmatpush.msra.mxu0 0.0
        %1521 = vmatpush.msra.mxu0 %v611
        %1522 = vmatpush.msra.mxu0 %v608
        %1523 = vmatpush.msra.mxu0 %v605
        %1524 = vmatpush.msra.mxu0 %v602
        %1525 = vmatmul.f32.gmra.mxu0 %v1469
        %v1526 = vpop.f32.mrf.mxu0
        %v1527 = vadd.f32 0.0, %v1526
        %1528 = vmatmul.f32.gmra.mxu0 %v1472
        %v1529 = vpop.f32.mrf.mxu0
        %v1530 = vadd.f32 0.0, %v1529
        %1531 = vmatmul.f32.gmra.mxu0 %v1475
        %v1532 = vpop.f32.mrf.mxu0
        %v1533 = vadd.f32 0.0, %v1532
        %1534 = vmatmul.f32.gmra.mxu0 %v1478
        %v1535 = vpop.f32.mrf.mxu0
        %v1536 = vadd.f32 0.0, %v1535
        %1537 = vdwg.mxu0
        %v1538 = vmax.f32 %v501, %v662
        %1539 = vmax.xlane.f32.xlu0 %v1538
        %v1540 = vpop.xlane.xlu0 %1539
        %v1541 = vmax.f32 %v504, %v665
        %1542 = vmax.xlane.f32.xlu0 %v1541
        %v1543 = vpop.xlane.xlu0 %1542
        %v1544 = vmax.f32 %v507, %v668
        %1545 = vmax.xlane.f32.xlu0 %v1544
        %v1546 = vpop.xlane.xlu0 %1545
        %v1547 = vmax.f32 %v510, %v671
        %1548 = vmax.xlane.f32.xlu0 %v1547
        %v1549 = vpop.xlane.xlu0 %1548
        %v1550 = vsub.f32 %v501, %v1540
        %v1551 = vsub.f32 %v662, %v1540
        %v1552 = vsub.f32 %v504, %v1543
        %v1553 = vsub.f32 %v665, %v1543
        %v1554 = vsub.f32 %v507, %v1546
        %v1555 = vsub.f32 %v668, %v1546
        %v1556 = vsub.f32 %v510, %v1549
        %v1557 = vsub.f32 %v671, %v1549
        %v1558 = vmul.f32 %v1550, 1.442695
        %v1559 = vpow.pop %v1558
        %v1560 = vmul.f32 %v1551, 1.442695
        %v1561 = vpow.pop %v1560
        %v1562 = vmul.f32 %v1552, 1.442695
        %v1563 = vpow.pop %v1562
        %v1564 = vmul.f32 %v1553, 1.442695
        %v1565 = vpow.pop %v1564
        %v1566 = vmul.f32 %v1554, 1.442695
        %v1567 = vpow.pop %v1566
        %v1568 = vmul.f32 %v1555, 1.442695
        %v1569 = vpow.pop %v1568
        %v1570 = vmul.f32 %v1556, 1.442695
        %v1571 = vpow.pop %v1570
        %v1572 = vmul.f32 %v1557, 1.442695
        %v1573 = vpow.pop %v1572
        %v1574 = vadd.f32 %v1559, %v1561
        %1575 = vadd.xlane.f32.xlu0 %v1574
        %v1576 = vpop.xlane.xlu0 %1575
        %v1577 = vadd.f32 %v1563, %v1565
        %1578 = vadd.xlane.f32.xlu0 %v1577
        %v1579 = vpop.xlane.xlu0 %1578
        %v1580 = vadd.f32 %v1567, %v1569
        %1581 = vadd.xlane.f32.xlu0 %v1580
        %v1582 = vpop.xlane.xlu0 %1581
        %v1583 = vadd.f32 %v1571, %v1573
        %1584 = vadd.xlane.f32.xlu0 %v1583
        %v1585 = vpop.xlane.xlu0 %1584
        %v1586 = vrcp.pop %v1576
        %v1587 = vmul.f32 %v1576, %v1586
        %v1588 = vsub.f32 1.0, %v1587
        %v1589 = vmul.f32 %v1586, %v1588
        %v1590 = vadd.f32 %v1586, %v1589
        %vm1591 = vweird.f32 %v1576
        %vm1592 = vweird.f32 %v1586
        %vm1593 = vmor %vm1591, %vm1592
        %v1594 = vsel %vm1593, %v1586, %v1590
        %v1595 = vand.u32 2147483647, %v1576
        %vm1596 = vcmp.eq.f32.partialorder %v1595, 8.507059e+37
        %v1597 = vand.u32 %v1576, 2147483648
        %v1598 = vor.u32 1.1754944e-38, %v1597
        %v1599 = vsel %vm1596, %v1598, %v1594
        %v1600 = vrcp.pop %v1579
        %v1601 = vmul.f32 %v1579, %v1600
        %v1602 = vsub.f32 1.0, %v1601
        %v1603 = vmul.f32 %v1600, %v1602
        %v1604 = vadd.f32 %v1600, %v1603
        %vm1605 = vweird.f32 %v1579
        %vm1606 = vweird.f32 %v1600
        %vm1607 = vmor %vm1605, %vm1606
        %v1608 = vsel %vm1607, %v1600, %v1604
        %v1609 = vand.u32 2147483647, %v1579
        %vm1610 = vcmp.eq.f32.partialorder %v1609, 8.507059e+37
        %v1611 = vand.u32 %v1579, 2147483648
        %v1612 = vor.u32 1.1754944e-38, %v1611
        %v1613 = vsel %vm1610, %v1612, %v1608
        %v1614 = vrcp.pop %v1582
        %v1615 = vmul.f32 %v1582, %v1614
        %v1616 = vsub.f32 1.0, %v1615
        %v1617 = vmul.f32 %v1614, %v1616
        %v1618 = vadd.f32 %v1614, %v1617
        %vm1619 = vweird.f32 %v1582
        %vm1620 = vweird.f32 %v1614
        %vm1621 = vmor %vm1619, %vm1620
        %v1622 = vsel %vm1621, %v1614, %v1618
        %v1623 = vand.u32 2147483647, %v1582
        %vm1624 = vcmp.eq.f32.partialorder %v1623, 8.507059e+37
        %v1625 = vand.u32 %v1582, 2147483648
        %v1626 = vor.u32 1.1754944e-38, %v1625
        %v1627 = vsel %vm1624, %v1626, %v1622
        %v1628 = vrcp.pop %v1585
        %v1629 = vmul.f32 %v1585, %v1628
        %v1630 = vsub.f32 1.0, %v1629
        %v1631 = vmul.f32 %v1628, %v1630
        %v1632 = vadd.f32 %v1628, %v1631
        %vm1633 = vweird.f32 %v1585
        %vm1634 = vweird.f32 %v1628
        %vm1635 = vmor %vm1633, %vm1634
        %v1636 = vsel %vm1635, %v1628, %v1632
        %v1637 = vand.u32 2147483647, %v1585
        %vm1638 = vcmp.eq.f32.partialorder %v1637, 8.507059e+37
        %v1639 = vand.u32 %v1585, 2147483648
        %v1640 = vor.u32 1.1754944e-38, %v1639
        %v1641 = vsel %vm1638, %v1640, %v1636
        %v1642 = vmul.f32 %v1559, %v1599
        %v1643 = vmul.f32 %v1561, %v1599
        %v1644 = vmul.f32 %v1563, %v1613
        %v1645 = vmul.f32 %v1565, %v1613
        %v1646 = vmul.f32 %v1567, %v1627
        %v1647 = vmul.f32 %v1569, %v1627
        %v1648 = vmul.f32 %v1571, %v1641
        %v1649 = vmul.f32 %v1573, %v1641
        %1650 = vmatpush.xpose.msra.mxu0 0.0
        %1651 = vmatpush.xpose.msra.mxu0 0.0
        %1652 = vmatpush.xpose.msra.mxu0 0.0
        %1653 = vmatpush.xpose.msra.mxu0 0.0
        %1654 = vmatpush.xpose.msra.mxu0 0.0
        %1655 = vmatpush.xpose.msra.mxu0 0.0
        %1656 = vmatpush.xpose.msra.mxu0 0.0
        %1657 = vmatpush.xpose.msra.mxu0 0.0
        %1658 = vmatpush.xpose.msra.mxu0 0.0
        %1659 = vmatpush.xpose.msra.mxu0 0.0
        %1660 = vmatpush.xpose.msra.mxu0 0.0
        %1661 = vmatpush.xpose.msra.mxu0 0.0
        %1662 = vmatpush.xpose.msra.mxu0 %v558
        %1663 = vmatpush.xpose.msra.mxu0 %v555
        %1664 = vmatpush.xpose.msra.mxu0 %v552
        %1665 = vmatpush.xpose.msra.mxu0 %v549
        %1666 = vmatmul.f32.gmra.mxu0 %v1642
        %v1667 = vpop.f32.mrf.mxu0
        %v1668 = vadd.f32 0.0, %v1667
        %1669 = vmatmul.f32.gmra.mxu0 %v1644
        %v1670 = vpop.f32.mrf.mxu0
        %v1671 = vadd.f32 0.0, %v1670
        %1672 = vmatmul.f32.gmra.mxu0 %v1646
        %v1673 = vpop.f32.mrf.mxu0
        %v1674 = vadd.f32 0.0, %v1673
        %1675 = vmatmul.f32.gmra.mxu0 %v1648
        %v1676 = vpop.f32.mrf.mxu0
        %v1677 = vadd.f32 0.0, %v1676
        %1678 = vdwg.mxu0
        %1679 = vmatpush.xpose.msra.mxu0 0.0
        %1680 = vmatpush.xpose.msra.mxu0 0.0
        %1681 = vmatpush.xpose.msra.mxu0 0.0
        %1682 = vmatpush.xpose.msra.mxu0 0.0
        %1683 = vmatpush.xpose.msra.mxu0 0.0
        %1684 = vmatpush.xpose.msra.mxu0 0.0
        %1685 = vmatpush.xpose.msra.mxu0 0.0
        %1686 = vmatpush.xpose.msra.mxu0 0.0
        %1687 = vmatpush.xpose.msra.mxu0 0.0
        %1688 = vmatpush.xpose.msra.mxu0 0.0
        %1689 = vmatpush.xpose.msra.mxu0 0.0
        %1690 = vmatpush.xpose.msra.mxu0 0.0
        %1691 = vmatpush.xpose.msra.mxu0 %v719
        %1692 = vmatpush.xpose.msra.mxu0 %v716
        %1693 = vmatpush.xpose.msra.mxu0 %v713
        %1694 = vmatpush.xpose.msra.mxu0 %v710
        %1695 = vmatmul.f32.gmra.mxu0 %v1643
        %v1696 = vpop.f32.mrf.mxu0
        %v1697 = vadd.f32 %v1668, %v1696
        %1698 = vmatmul.f32.gmra.mxu0 %v1645
        %v1699 = vpop.f32.mrf.mxu0
        %v1700 = vadd.f32 %v1671, %v1699
        %1701 = vmatmul.f32.gmra.mxu0 %v1647
        %v1702 = vpop.f32.mrf.mxu0
        %v1703 = vadd.f32 %v1674, %v1702
        %1704 = vmatmul.f32.gmra.mxu0 %v1649
        %v1705 = vpop.f32.mrf.mxu0
        %v1706 = vadd.f32 %v1677, %v1705
        %1707 = vdwg.mxu0
        %1708 = vxpose.xlu0.b32.start [1/16] %v1697, 128
        %1709 = vxpose.xlu0.b32.cont [2/16] %v1700, 128
        %1710 = vxpose.xlu0.b32.cont [3/16] %v1703, 128
        %1711 = vxpose.xlu0.b32.cont [4/16] %v1706, 128
        %1712 = vxpose.xlu0.b32.cont [5/16] 0.0, 128
        %1713 = vxpose.xlu0.b32.cont [6/16] 0.0, 128
        %1714 = vxpose.xlu0.b32.cont [7/16] 0.0, 128
        %1715 = vxpose.xlu0.b32.cont [8/16] 0.0, 128
        %1716 = vxpose.xlu0.b32.cont [9/16] 0.0, 128
        %1717 = vxpose.xlu0.b32.cont [10/16] 0.0, 128
        %1718 = vxpose.xlu0.b32.cont [11/16] 0.0, 128
        %1719 = vxpose.xlu0.b32.cont [12/16] 0.0, 128
        %1720 = vxpose.xlu0.b32.cont [13/16] 0.0, 128
        %1721 = vxpose.xlu0.b32.cont [14/16] 0.0, 128
        %1722 = vxpose.xlu0.b32.cont [15/16] 0.0, 128
        %1723 = vxpose.xlu0.b32.end [16/16] 0.0, 128
        %v1724 = vpop.trf.xlu0
        %v1725 = vpop.trf.xlu0
        %v1726 = vpop.trf.xlu0
        %v1727 = vpop.trf.xlu0
        %v1728 = vpop.trf.xlu0
        %v1729 = vpop.trf.xlu0
        %v1730 = vpop.trf.xlu0
        %v1731 = vpop.trf.xlu0
        %v1732 = vpop.trf.xlu0
        %v1733 = vpop.trf.xlu0
        %v1734 = vpop.trf.xlu0
        %v1735 = vpop.trf.xlu0
        %v1736 = vpop.trf.xlu0
        %v1737 = vpop.trf.xlu0
        %v1738 = vpop.trf.xlu0
        %v1739 = vpop.trf.xlu0
        %v1741 = vsel %vm923, %v1724, 0
        %v1744 = vsel %vm923, %v1725, 0
        %v1747 = vsel %vm923, %v1726, 0
        %v1750 = vsel %vm923, %v1727, 0
        %1752 = vmatpush.msra.mxu0 0.0
        %1753 = vmatpush.msra.mxu0 0.0
        %1754 = vmatpush.msra.mxu0 0.0
        %1755 = vmatpush.msra.mxu0 0.0
        %1756 = vmatpush.msra.mxu0 0.0
        %1757 = vmatpush.msra.mxu0 0.0
        %1758 = vmatpush.msra.mxu0 0.0
        %1759 = vmatpush.msra.mxu0 0.0
        %1760 = vmatpush.msra.mxu0 0.0
        %1761 = vmatpush.msra.mxu0 0.0
        %1762 = vmatpush.msra.mxu0 0.0
        %1763 = vmatpush.msra.mxu0 0.0
        %1764 = vmatpush.msra.mxu0 %v462
        %1765 = vmatpush.msra.mxu0 %v459
        %1766 = vmatpush.msra.mxu0 %v456
        %1767 = vmatpush.msra.mxu0 %v453
        %1768 = vmatmul.f32.gmra.mxu0 %v1741
        %v1769 = vpop.f32.mrf.mxu0
        %v1770 = vadd.f32 0.0, %v1769
        %1771 = vmatmul.f32.gmra.mxu0 %v1744
        %v1772 = vpop.f32.mrf.mxu0
        %v1773 = vadd.f32 0.0, %v1772
        %1774 = vmatmul.f32.gmra.mxu0 %v1747
        %v1775 = vpop.f32.mrf.mxu0
        %v1776 = vadd.f32 0.0, %v1775
        %1777 = vmatmul.f32.gmra.mxu0 %v1750
        %v1778 = vpop.f32.mrf.mxu0
        %v1779 = vadd.f32 0.0, %v1778
        %1780 = vdwg.mxu0
        %1781 = vmatpush.msra.mxu0 0.0
        %1782 = vmatpush.msra.mxu0 0.0
        %1783 = vmatpush.msra.mxu0 0.0
        %1784 = vmatpush.msra.mxu0 0.0
        %1785 = vmatpush.msra.mxu0 0.0
        %1786 = vmatpush.msra.mxu0 0.0
        %1787 = vmatpush.msra.mxu0 0.0
        %1788 = vmatpush.msra.mxu0 0.0
        %1789 = vmatpush.msra.mxu0 0.0
        %1790 = vmatpush.msra.mxu0 0.0
        %1791 = vmatpush.msra.mxu0 0.0
        %1792 = vmatpush.msra.mxu0 0.0
        %1793 = vmatpush.msra.mxu0 %v623
        %1794 = vmatpush.msra.mxu0 %v620
        %1795 = vmatpush.msra.mxu0 %v617
        %1796 = vmatpush.msra.mxu0 %v614
        %1797 = vmatmul.f32.gmra.mxu0 %v1741
        %v1798 = vpop.f32.mrf.mxu0
        %v1799 = vadd.f32 0.0, %v1798
        %1800 = vmatmul.f32.gmra.mxu0 %v1744
        %v1801 = vpop.f32.mrf.mxu0
        %v1802 = vadd.f32 0.0, %v1801
        %1803 = vmatmul.f32.gmra.mxu0 %v1747
        %v1804 = vpop.f32.mrf.mxu0
        %v1805 = vadd.f32 0.0, %v1804
        %1806 = vmatmul.f32.gmra.mxu0 %v1750
        %v1807 = vpop.f32.mrf.mxu0
        %v1808 = vadd.f32 0.0, %v1807
        %1809 = vdwg.mxu0
        %v1810 = vld [vmem:[%s2] sm:$0xf]
        %v1811 = vld [vmem:[%s3] sm:$0xf]
        %1813 = vset.pattern.permute.xlu0 0
        %1814 = vperm.xlu0 %1813, %v1811
        %v1815 = vpop.permute.xlu0 %1814
        %1817 = vmatpush.msra.mxu0 %v1779
        %1818 = vmatpush.msra.mxu0 %v1776
        %1819 = vmatpush.msra.mxu0 %v1773
        %1820 = vmatpush.msra.mxu0 %v1770
        %1821 = vmatpush.msra.mxu0 %v1507
        %1822 = vmatpush.msra.mxu0 %v1504
        %1823 = vmatpush.msra.mxu0 %v1501
        %1824 = vmatpush.msra.mxu0 %v1498
        %1825 = vmatpush.msra.mxu0 %v1235
        %1826 = vmatpush.msra.mxu0 %v1232
        %1827 = vmatpush.msra.mxu0 %v1229
        %1828 = vmatpush.msra.mxu0 %v1226
        %1829 = vmatpush.msra.mxu0 %v963
        %1830 = vmatpush.msra.mxu0 %v960
        %1831 = vmatpush.msra.mxu0 %v957
        %1832 = vmatpush.msra.mxu0 %v954
        %1833 = vmatmul.f32.gmra.mxu0 %v1810
        %v1834 = vpop.f32.mrf.mxu0
        %v1835 = vadd.f32 %v1815, %v1834
        %1836 = vdwg.mxu0
        %1837 = vmatpush.msra.mxu0 %v1808
        %1838 = vmatpush.msra.mxu0 %v1805
        %1839 = vmatpush.msra.mxu0 %v1802
        %1840 = vmatpush.msra.mxu0 %v1799
        %1841 = vmatpush.msra.mxu0 %v1536
        %1842 = vmatpush.msra.mxu0 %v1533
        %1843 = vmatpush.msra.mxu0 %v1530
        %1844 = vmatpush.msra.mxu0 %v1527
        %1845 = vmatpush.msra.mxu0 %v1264
        %1846 = vmatpush.msra.mxu0 %v1261
        %1847 = vmatpush.msra.mxu0 %v1258
        %1848 = vmatpush.msra.mxu0 %v1255
        %1849 = vmatpush.msra.mxu0 %v992
        %1850 = vmatpush.msra.mxu0 %v989
        %1851 = vmatpush.msra.mxu0 %v986
        %1852 = vmatpush.msra.mxu0 %v983
        %1853 = vmatmul.f32.gmra.mxu0 %v1810
        %v1854 = vpop.f32.mrf.mxu0
        %v1855 = vadd.f32 %v1815, %v1854
        %1856 = vdwg.mxu0
        %v1859 = vrot.slane %v1855, 4
        %v1860 = vsel %vm394, %v1835, %v1859
        %1862 = vst [vmem:[%s190] sm:$0xff] %v1860
        %s1863 = sand.u32 %s115, 1
        %s1864 = scalar_lea.sflag [#allocation3], %s1863
        %s1865 = sand.u32 %s115, 1
        %s1866 = smul.addr %s1865, 8
        %s1867 = scalar_lea.vmem [#allocation2], %s1866
        // Predicated region
        $region37: #{tpu_custom_call.1} parent=35 // pred_check
          %p1868 = pneg %p125
        $region38: #{tpu_custom_call.1} parent=35 // pred_check_branch
          %1870 = sbr.rel (%p1868) target = $region40
        $region39: #{tpu_custom_call.1} parent=35 // pred_region
          %1872 = vsyncadd %s1864, 0
          %s1873 = smul.addr %s18, 2
          %s1874 = smul.addr %s1873, 4
          %s1875 = scalar_lea.hbm %s4, %s1874
          %s1877 = sshll.u32 %s1867, 4
          %s1878 = int_to_ptr.vmem [resolvable:$true] %s1877
          %s1879 = sshll.u32 %s1875, 4
          %s1880 = int_to_ptr.hbm [resolvable:$true] %s1879
          %1882 = dma.vmem_to_hbm [thread:$0]  %s1878, 128, %s1880, %s1864
        $region40: #{tpu_custom_call.1} parent=35 // pred_fallthru
          _
      $region36: #{tpu_custom_call.1} parent=5 // pred_fallthru
        _
      %p1883 = scmp.le.s32.totalorder 2, %s13
      // Predicated region
      $region41: #{tpu_custom_call.1} parent=5 // pred_check
        %p1884 = pneg %p1883
      $region42: #{tpu_custom_call.1} parent=5 // pred_check_branch
        %1886 = sbr.rel (%p1884) target = $region44
      $region43: #{tpu_custom_call.1} parent=5 // pred_region
        %s1887 = ssub.s32 %s13, 2
        // Predicated region
        $region45: #{tpu_custom_call.1} parent=43 // pred_check
          %p1888 = pneg %p131
        $region46: #{tpu_custom_call.1} parent=43 // pred_check_branch
          %1890 = sbr.rel (%p1888) target = $region48
        $region47: #{tpu_custom_call.1} parent=43 // pred_region
          %s1891 = sand.u32 %s116, 1
          %s1892 = scalar_lea.sflag [#allocation3], %s1891
          %s1893 = sand.u32 %s116, 1
          %s1894 = smul.addr %s1893, 8
          %s1895 = scalar_lea.vmem [#allocation2], %s1894
          %1897 = dma.done %s1892, 128
        $region48: #{tpu_custom_call.1} parent=43 // pred_fallthru
          _
      $region44: #{tpu_custom_call.1} parent=5 // pred_fallthru
        _
    $region6: #{tpu_custom_call.1} parent=1 // loop_footer
      %s17 = sadd.s32 1, %s13
    $region7: #{tpu_custom_call.1} parent=1 // loop_footer_branch
      %12 = sbr.rel target = $region3
    $region8: #{tpu_custom_call.1} parent=1 // loop_exit
      _
    %1898 = vsyncpa [#allocation3], 1
    %s1899 = scalar_lea.sflag [#allocation3], 1
    %1900 = vsyncpa %s1899, 1

</llo_original>
